<compile_context>
chip_gen: v7x
topology: tpu7x:2x2x1
jax: 0.10.0
libtpu: 0.0.40
codegen_flags: <defaults>
</compile_context>

<pallas_src>
import functools

import jax
import jax.numpy as jnp
from jax import lax
from jax.experimental import pallas as pl
from jax.experimental.pallas import tpu as pltpu


# ----------------------------- Pallas kernel ------------------------------- #

def _dw_unit_body(x, w1_ref, tab_ref, *, img_w, lanes):
    """One DWUnit on a (cin, lanes) f32 slab; returns (cout, lanes) f32.

    tab_ref: (10, cout, lanes).  Rows 0..8 are the depthwise 3x3 taps with
    the BN scale and SAME-padding boundary masks pre-multiplied in; row 9 is
    the folded BN bias broadcast over lanes.
    """
    # --- 1x1 conv over channels on the MXU ----------------------------------
    y = jnp.dot(w1_ref[...], x,
                preferred_element_type=jnp.float32,
                precision=jax.lax.Precision.HIGHEST)          # (cout, lanes)

    # --- depthwise 3x3 (pad=1) + folded BN + ReLU ----------------------------
    # Each tap = one XLU lane rotation of the flattened spatial axis plus one
    # VPU multiply-add (scale*mask pre-fused into the table).  Accumulator is
    # initialized with the folded BN bias (tab[9]) instead of zeros.
    acc = tab_ref[9]
    k = 0
    for oh in (-1, 0, 1):
        for ow in (-1, 0, 1):
            off = oh * img_w + ow            # flat lane offset of tap (oh, ow)
            tap = pltpu.roll(y, (-off) % lanes, axis=1) if off else y
            acc = acc + tap * tab_ref[k]
            k += 1
    return jnp.maximum(acc, 0.0)


def _dw_block_kernel(x_ref, w1a_ref, taba_ref, w1b_ref, tabb_ref, o_ref,
                     *, img_w, lanes):
    x = x_ref[...].astype(jnp.float32)                        # (cin, lanes)
    a1 = _dw_unit_body(x, w1a_ref, taba_ref, img_w=img_w, lanes=lanes)
    a2 = _dw_unit_body(a1, w1b_ref, tabb_ref, img_w=img_w, lanes=lanes)
    o_ref[...] = a2.astype(o_ref.dtype)                       # (c2, lanes)


# ------------------------------- Wrapper ------------------------------------ #

def _tap_masks(h, w):
    """(9, h*w) f32 masks: 1.0 where the shifted tap stays inside the image."""
    hh, ww = jnp.meshgrid(jnp.arange(h), jnp.arange(w), indexing="ij")
    rows = []
    for oh in (-1, 0, 1):
        for ow in (-1, 0, 1):
            m = ((hh + oh >= 0) & (hh + oh < h) &
                 (ww + ow >= 0) & (ww + ow < w))
            rows.append(m.reshape(-1))
    return jnp.stack(rows).astype(jnp.float32)


def _build_unit_table(p, h, w, images_per_chunk, eps=1e-5):
    """Fold eval-mode BN + boundary masks into one (10, cout, lanes) table."""
    scale = p["gamma"] / jnp.sqrt(p["var"] + eps)
    bias = p["beta"] - p["mean"] * scale
    cout = p["w3"].shape[0]
    lanes = images_per_chunk * h * w
    w3s = p["w3"].reshape(cout, 9) * scale[:, None]            # (cout, 9)
    masks = jnp.tile(_tap_masks(h, w), (1, images_per_chunk))  # (9, lanes)
    taps = w3s.T[:, :, None] * masks[:, None, :]               # (9, cout, lanes)
    bias_row = jnp.broadcast_to(bias[None, :, None], (1, cout, lanes))
    return p["w1"], jnp.concatenate([taps, bias_row], axis=0)  # (10,cout,lanes)


def _pick_num_chunks(n):
    """One big grid step per TensorCore: 1 on v5e/v6e, 2 on v7x."""
    try:
        kind = jax.devices()[0].device_kind.lower()
    except Exception:
        kind = ""
    ntc = 2 if "7" in kind else 1          # v7x has 2 TCs/chip; v5e/v6e have 1
    c = max(1, min(n, ntc))
    while n % c:                           # keep chunks equal-sized
        c -= 1
    return c


def _rep_spec(a):
    """Replicated (constant index_map) BlockSpec for a parameter array."""
    if a.ndim == 2:
        return pl.BlockSpec(a.shape, lambda i: (0, 0))
    return pl.BlockSpec(a.shape, lambda i: (0, 0, 0))


def dw_block(x_nchw, params, num_chunks=None):
    """DWBlock forward.  Input/output are NCHW (PyTorch convention)."""
    n, cin, h, w = x_nchw.shape
    hw = h * w
    if num_chunks is None:
        num_chunks = _pick_num_chunks(n)
    num_chunks = max(1, min(num_chunks, n))
    while n % num_chunks:
        num_chunks -= 1
    nc = n // num_chunks                       # images per grid step
    lanes = nc * hw

    c2 = params[1]["w1"].shape[0]

    w1a, taba = _build_unit_table(params[0], h, w, nc)
    w1b, tabb = _build_unit_table(params[1], h, w, nc)

    # (num_chunks, cin, nc*hw): each chunk's images concatenated on the lane
    # axis -> lane-dense slabs, one big grid step per TensorCore.
    x_chunks = (x_nchw.reshape(num_chunks, nc, cin, hw)
                      .transpose(0, 2, 1, 3)
                      .reshape(num_chunks, cin, lanes))

    # TODO(synk): bf16 HBM storage / bf16 tap math for v6e/v7x once sizes grow
    # beyond toy scale (keep f32 accumulation; loosen test tolerance).
    out = pl.pallas_call(
        functools.partial(_dw_block_kernel, img_w=w, lanes=lanes),
        out_shape=jax.ShapeDtypeStruct((num_chunks, c2, lanes), jnp.float32),
        grid=(num_chunks,),
        in_specs=[
            pl.BlockSpec((None, cin, lanes), lambda i: (i, 0, 0)),
            _rep_spec(w1a), _rep_spec(taba),
            _rep_spec(w1b), _rep_spec(tabb),
        ],
        out_specs=pl.BlockSpec((None, c2, lanes), lambda i: (i, 0, 0)),
        compiler_params=pltpu.CompilerParams(
            dimension_semantics=("parallel",)),
    )(x_chunks, w1a, taba, w1b, tabb)

    return (out.reshape(num_chunks, c2, nc, hw)
               .transpose(0, 2, 1, 3)
               .reshape(n, c2, h, w))


# --------------------- deterministic parameter creation --------------------- #

def make_dw_unit_params(key, cin, cout):
    ks = jax.random.split(key, 6)
    w1 = jax.random.normal(ks[0], (cout, cin), jnp.float32) / jnp.sqrt(cin)
    w3 = jax.random.normal(ks[1], (cout, 3, 3), jnp.float32) * 0.3
    gamma = 1.0 + 0.1 * jax.random.normal(ks[2], (cout,), jnp.float32)
    beta = 0.1 * jax.random.normal(ks[3], (cout,), jnp.float32)
    mean = 0.1 * jax.random.normal(ks[4], (cout,), jnp.float32)
    var = 0.5 + 0.5 * jnp.abs(jax.random.normal(ks[5], (cout,), jnp.float32))
    return {"w1": w1, "w3": w3, "gamma": gamma, "beta": beta,
            "mean": mean, "var": var}


# ------------------------ pure-JAX reference (check) ------------------------ #

def ref_dw_unit(x, p, eps=1e-5):
    cout, cin = p["w1"].shape
    y = lax.conv_general_dilated(
        x, p["w1"].reshape(cout, cin, 1, 1), (1, 1), "VALID",
        dimension_numbers=("NCHW", "OIHW", "NCHW"),
        precision=lax.Precision.HIGHEST)
    y = lax.conv_general_dilated(
        y, p["w3"].reshape(cout, 1, 3, 3), (1, 1), "SAME",
        dimension_numbers=("NCHW", "OIHW", "NCHW"),
        feature_group_count=cout, precision=lax.Precision.HIGHEST)
    scale = p["gamma"] / jnp.sqrt(p["var"] + eps)
    bias = p["beta"] - p["mean"] * scale
    y = y * scale[None, :, None, None] + bias[None, :, None, None]
    return jnp.maximum(y, 0.0)


def ref_dw_block(x, params):
    for p in params:
        x = ref_dw_unit(x, p)
    return x


# ----------------------------------- main ----------------------------------- #

if __name__ == "__main__":
    key = jax.random.PRNGKey(0)
    k_x, k_u1, k_u2 = jax.random.split(key, 3)

    N, Cin, H, W = 2, 4, 16, 16
    Cout = 8

    x = jax.random.normal(k_x, (N, Cin, H, W), jnp.float32)   # NCHW, like PyTorch
    params = [
        make_dw_unit_params(k_u1, Cin, Cout),
        make_dw_unit_params(k_u2, Cout, Cout),
    ]

    out = jax.block_until_ready(dw_block(x, params))
    ref = ref_dw_block(x, params)

    assert out.shape == (N, Cout, H, W), out.shape
    assert jnp.allclose(out, ref, atol=1e-4, rtol=1e-4), (
        float(jnp.max(jnp.abs(out - ref))))

    print("KERNEL_OK")
</pallas_src>

<mosaic_0001>
module attributes {stable_mosaic.version = 11 : i64} {
  func.func @_dw_block_kernel(%arg0: i32, %arg1: memref<1x4x512xf32, #tpu.memory_space<vmem>>, %arg2: memref<8x4xf32, #tpu.memory_space<vmem>>, %arg3: memref<10x8x512xf32, #tpu.memory_space<vmem>>, %arg4: memref<8x8xf32, #tpu.memory_space<vmem>>, %arg5: memref<10x8x512xf32, #tpu.memory_space<vmem>>, %arg6: memref<1x8x512xf32, #tpu.memory_space<vmem>>) attributes {dimension_semantics = [#tpu.dimension_semantics<parallel>], iteration_bounds = array<i64: 1>, scalar_prefetch = 0 : i64, scratch_operands = 0 : i64, tpu.core_type = #tpu.core_type<tc>, window_params = [{transform_indices = @transform_0, window_bounds = array<i64: 1, 4, 512>}, {pipeline_mode = #tpu.pipeline_mode<synchronous>, transform_indices = @transform_1, window_bounds = array<i64: 8, 4>}, {pipeline_mode = #tpu.pipeline_mode<synchronous>, transform_indices = @transform_2, window_bounds = array<i64: 10, 8, 512>}, {pipeline_mode = #tpu.pipeline_mode<synchronous>, transform_indices = @transform_3, window_bounds = array<i64: 8, 8>}, {pipeline_mode = #tpu.pipeline_mode<synchronous>, transform_indices = @transform_4, window_bounds = array<i64: 10, 8, 512>}, {transform_indices = @transform_5, window_bounds = array<i64: 1, 8, 512>}]} {
    %c0 = arith.constant 0 : index
    %c0_0 = arith.constant 0 : index
    %c0_1 = arith.constant 0 : index
    %0 = vector.load %arg1[%c0, %c0_0, %c0_1] : memref<1x4x512xf32, #tpu.memory_space<vmem>>, vector<1x4x512xf32>
    %1 = vector.shape_cast %0 : vector<1x4x512xf32> to vector<4x512xf32>
    %c0_2 = arith.constant 0 : index
    %c0_3 = arith.constant 0 : index
    %2 = vector.load %arg2[%c0_2, %c0_3] : memref<8x4xf32, #tpu.memory_space<vmem>>, vector<8x4xf32>
    %cst = arith.constant dense<0.000000e+00> : vector<8x512xf32>
    %3 = tpu.matmul %2, %1, %cst {dimension_numbers = #tpu.dot_dimension_numbers<[1], [0], [0], [1], [0, 0, 1, 1], [], []>, precision = #tpu.contract_precision<fp32>} : vector<8x4xf32>, vector<4x512xf32>, vector<8x512xf32> -> vector<8x512xf32>
    %c9 = arith.constant 9 : index
    %c0_4 = arith.constant 0 : index
    %c0_5 = arith.constant 0 : index
    %4 = vector.load %arg3[%c9, %c0_4, %c0_5] : memref<10x8x512xf32, #tpu.memory_space<vmem>>, vector<1x8x512xf32>
    %5 = vector.shape_cast %4 : vector<1x8x512xf32> to vector<8x512xf32>
    %c17_i32 = arith.constant 17 : i32
    %6 = tpu.dynamic_rotate %3 by %c17_i32 dim 1 : vector<8x512xf32>, i32 -> vector<8x512xf32>
    %c0_6 = arith.constant 0 : index
    %c0_7 = arith.constant 0 : index
    %c0_8 = arith.constant 0 : index
    %7 = vector.load %arg3[%c0_6, %c0_7, %c0_8] : memref<10x8x512xf32, #tpu.memory_space<vmem>>, vector<1x8x512xf32>
    %8 = vector.shape_cast %7 : vector<1x8x512xf32> to vector<8x512xf32>
    %9 = arith.mulf %6, %8 : vector<8x512xf32>
    %10 = arith.addf %5, %9 : vector<8x512xf32>
    %c16_i32 = arith.constant 16 : i32
    %11 = tpu.dynamic_rotate %3 by %c16_i32 dim 1 : vector<8x512xf32>, i32 -> vector<8x512xf32>
    %c1 = arith.constant 1 : index
    %c0_9 = arith.constant 0 : index
    %c0_10 = arith.constant 0 : index
    %12 = vector.load %arg3[%c1, %c0_9, %c0_10] : memref<10x8x512xf32, #tpu.memory_space<vmem>>, vector<1x8x512xf32>
    %13 = vector.shape_cast %12 : vector<1x8x512xf32> to vector<8x512xf32>
    %14 = arith.mulf %11, %13 : vector<8x512xf32>
    %15 = arith.addf %10, %14 : vector<8x512xf32>
    %c15_i32 = arith.constant 15 : i32
    %16 = tpu.dynamic_rotate %3 by %c15_i32 dim 1 : vector<8x512xf32>, i32 -> vector<8x512xf32>
    %c2 = arith.constant 2 : index
    %c0_11 = arith.constant 0 : index
    %c0_12 = arith.constant 0 : index
    %17 = vector.load %arg3[%c2, %c0_11, %c0_12] : memref<10x8x512xf32, #tpu.memory_space<vmem>>, vector<1x8x512xf32>
    %18 = vector.shape_cast %17 : vector<1x8x512xf32> to vector<8x512xf32>
    %19 = arith.mulf %16, %18 : vector<8x512xf32>
    %20 = arith.addf %15, %19 : vector<8x512xf32>
    %c1_i32 = arith.constant 1 : i32
    %21 = tpu.dynamic_rotate %3 by %c1_i32 dim 1 : vector<8x512xf32>, i32 -> vector<8x512xf32>
    %c3 = arith.constant 3 : index
    %c0_13 = arith.constant 0 : index
    %c0_14 = arith.constant 0 : index
    %22 = vector.load %arg3[%c3, %c0_13, %c0_14] : memref<10x8x512xf32, #tpu.memory_space<vmem>>, vector<1x8x512xf32>
    %23 = vector.shape_cast %22 : vector<1x8x512xf32> to vector<8x512xf32>
    %24 = arith.mulf %21, %23 : vector<8x512xf32>
    %25 = arith.addf %20, %24 : vector<8x512xf32>
    %c4 = arith.constant 4 : index
    %c0_15 = arith.constant 0 : index
    %c0_16 = arith.constant 0 : index
    %26 = vector.load %arg3[%c4, %c0_15, %c0_16] : memref<10x8x512xf32, #tpu.memory_space<vmem>>, vector<1x8x512xf32>
    %27 = vector.shape_cast %26 : vector<1x8x512xf32> to vector<8x512xf32>
    %28 = arith.mulf %3, %27 : vector<8x512xf32>
    %29 = arith.addf %25, %28 : vector<8x512xf32>
    %c511_i32 = arith.constant 511 : i32
    %30 = tpu.dynamic_rotate %3 by %c511_i32 dim 1 : vector<8x512xf32>, i32 -> vector<8x512xf32>
    %c5 = arith.constant 5 : index
    %c0_17 = arith.constant 0 : index
    %c0_18 = arith.constant 0 : index
    %31 = vector.load %arg3[%c5, %c0_17, %c0_18] : memref<10x8x512xf32, #tpu.memory_space<vmem>>, vector<1x8x512xf32>
    %32 = vector.shape_cast %31 : vector<1x8x512xf32> to vector<8x512xf32>
    %33 = arith.mulf %30, %32 : vector<8x512xf32>
    %34 = arith.addf %29, %33 : vector<8x512xf32>
    %c497_i32 = arith.constant 497 : i32
    %35 = tpu.dynamic_rotate %3 by %c497_i32 dim 1 : vector<8x512xf32>, i32 -> vector<8x512xf32>
    %c6 = arith.constant 6 : index
    %c0_19 = arith.constant 0 : index
    %c0_20 = arith.constant 0 : index
    %36 = vector.load %arg3[%c6, %c0_19, %c0_20] : memref<10x8x512xf32, #tpu.memory_space<vmem>>, vector<1x8x512xf32>
    %37 = vector.shape_cast %36 : vector<1x8x512xf32> to vector<8x512xf32>
    %38 = arith.mulf %35, %37 : vector<8x512xf32>
    %39 = arith.addf %34, %38 : vector<8x512xf32>
    %c496_i32 = arith.constant 496 : i32
    %40 = tpu.dynamic_rotate %3 by %c496_i32 dim 1 : vector<8x512xf32>, i32 -> vector<8x512xf32>
    %c7 = arith.constant 7 : index
    %c0_21 = arith.constant 0 : index
    %c0_22 = arith.constant 0 : index
    %41 = vector.load %arg3[%c7, %c0_21, %c0_22] : memref<10x8x512xf32, #tpu.memory_space<vmem>>, vector<1x8x512xf32>
    %42 = vector.shape_cast %41 : vector<1x8x512xf32> to vector<8x512xf32>
    %43 = arith.mulf %40, %42 : vector<8x512xf32>
    %44 = arith.addf %39, %43 : vector<8x512xf32>
    %c495_i32 = arith.constant 495 : i32
    %45 = tpu.dynamic_rotate %3 by %c495_i32 dim 1 : vector<8x512xf32>, i32 -> vector<8x512xf32>
    %c8 = arith.constant 8 : index
    %c0_23 = arith.constant 0 : index
    %c0_24 = arith.constant 0 : index
    %46 = vector.load %arg3[%c8, %c0_23, %c0_24] : memref<10x8x512xf32, #tpu.memory_space<vmem>>, vector<1x8x512xf32>
    %47 = vector.shape_cast %46 : vector<1x8x512xf32> to vector<8x512xf32>
    %48 = arith.mulf %45, %47 : vector<8x512xf32>
    %49 = arith.addf %44, %48 : vector<8x512xf32>
    %cst_25 = arith.constant 0.000000e+00 : f32
    %50 = vector.broadcast %cst_25 : f32 to vector<8x512xf32>
    %51 = arith.maximumf %49, %50 : vector<8x512xf32>
    %c0_26 = arith.constant 0 : index
    %c0_27 = arith.constant 0 : index
    %52 = vector.load %arg4[%c0_26, %c0_27] : memref<8x8xf32, #tpu.memory_space<vmem>>, vector<8x8xf32>
    %cst_28 = arith.constant dense<0.000000e+00> : vector<8x512xf32>
    %53 = tpu.matmul %52, %51, %cst_28 {dimension_numbers = #tpu.dot_dimension_numbers<[1], [0], [0], [1], [0, 0, 1, 1], [], []>, precision = #tpu.contract_precision<fp32>} : vector<8x8xf32>, vector<8x512xf32>, vector<8x512xf32> -> vector<8x512xf32>
    %c9_29 = arith.constant 9 : index
    %c0_30 = arith.constant 0 : index
    %c0_31 = arith.constant 0 : index
    %54 = vector.load %arg5[%c9_29, %c0_30, %c0_31] : memref<10x8x512xf32, #tpu.memory_space<vmem>>, vector<1x8x512xf32>
    %55 = vector.shape_cast %54 : vector<1x8x512xf32> to vector<8x512xf32>
    %c17_i32_32 = arith.constant 17 : i32
    %56 = tpu.dynamic_rotate %53 by %c17_i32_32 dim 1 : vector<8x512xf32>, i32 -> vector<8x512xf32>
    %c0_33 = arith.constant 0 : index
    %c0_34 = arith.constant 0 : index
    %c0_35 = arith.constant 0 : index
    %57 = vector.load %arg5[%c0_33, %c0_34, %c0_35] : memref<10x8x512xf32, #tpu.memory_space<vmem>>, vector<1x8x512xf32>
    %58 = vector.shape_cast %57 : vector<1x8x512xf32> to vector<8x512xf32>
    %59 = arith.mulf %56, %58 : vector<8x512xf32>
    %60 = arith.addf %55, %59 : vector<8x512xf32>
    %c16_i32_36 = arith.constant 16 : i32
    %61 = tpu.dynamic_rotate %53 by %c16_i32_36 dim 1 : vector<8x512xf32>, i32 -> vector<8x512xf32>
    %c1_37 = arith.constant 1 : index
    %c0_38 = arith.constant 0 : index
    %c0_39 = arith.constant 0 : index
    %62 = vector.load %arg5[%c1_37, %c0_38, %c0_39] : memref<10x8x512xf32, #tpu.memory_space<vmem>>, vector<1x8x512xf32>
    %63 = vector.shape_cast %62 : vector<1x8x512xf32> to vector<8x512xf32>
    %64 = arith.mulf %61, %63 : vector<8x512xf32>
    %65 = arith.addf %60, %64 : vector<8x512xf32>
    %c15_i32_40 = arith.constant 15 : i32
    %66 = tpu.dynamic_rotate %53 by %c15_i32_40 dim 1 : vector<8x512xf32>, i32 -> vector<8x512xf32>
    %c2_41 = arith.constant 2 : index
    %c0_42 = arith.constant 0 : index
    %c0_43 = arith.constant 0 : index
    %67 = vector.load %arg5[%c2_41, %c0_42, %c0_43] : memref<10x8x512xf32, #tpu.memory_space<vmem>>, vector<1x8x512xf32>
    %68 = vector.shape_cast %67 : vector<1x8x512xf32> to vector<8x512xf32>
    %69 = arith.mulf %66, %68 : vector<8x512xf32>
    %70 = arith.addf %65, %69 : vector<8x512xf32>
    %c1_i32_44 = arith.constant 1 : i32
    %71 = tpu.dynamic_rotate %53 by %c1_i32_44 dim 1 : vector<8x512xf32>, i32 -> vector<8x512xf32>
    %c3_45 = arith.constant 3 : index
    %c0_46 = arith.constant 0 : index
    %c0_47 = arith.constant 0 : index
    %72 = vector.load %arg5[%c3_45, %c0_46, %c0_47] : memref<10x8x512xf32, #tpu.memory_space<vmem>>, vector<1x8x512xf32>
    %73 = vector.shape_cast %72 : vector<1x8x512xf32> to vector<8x512xf32>
    %74 = arith.mulf %71, %73 : vector<8x512xf32>
    %75 = arith.addf %70, %74 : vector<8x512xf32>
    %c4_48 = arith.constant 4 : index
    %c0_49 = arith.constant 0 : index
    %c0_50 = arith.constant 0 : index
    %76 = vector.load %arg5[%c4_48, %c0_49, %c0_50] : memref<10x8x512xf32, #tpu.memory_space<vmem>>, vector<1x8x512xf32>
    %77 = vector.shape_cast %76 : vector<1x8x512xf32> to vector<8x512xf32>
    %78 = arith.mulf %53, %77 : vector<8x512xf32>
    %79 = arith.addf %75, %78 : vector<8x512xf32>
    %c511_i32_51 = arith.constant 511 : i32
    %80 = tpu.dynamic_rotate %53 by %c511_i32_51 dim 1 : vector<8x512xf32>, i32 -> vector<8x512xf32>
    %c5_52 = arith.constant 5 : index
    %c0_53 = arith.constant 0 : index
    %c0_54 = arith.constant 0 : index
    %81 = vector.load %arg5[%c5_52, %c0_53, %c0_54] : memref<10x8x512xf32, #tpu.memory_space<vmem>>, vector<1x8x512xf32>
    %82 = vector.shape_cast %81 : vector<1x8x512xf32> to vector<8x512xf32>
    %83 = arith.mulf %80, %82 : vector<8x512xf32>
    %84 = arith.addf %79, %83 : vector<8x512xf32>
    %c497_i32_55 = arith.constant 497 : i32
    %85 = tpu.dynamic_rotate %53 by %c497_i32_55 dim 1 : vector<8x512xf32>, i32 -> vector<8x512xf32>
    %c6_56 = arith.constant 6 : index
    %c0_57 = arith.constant 0 : index
    %c0_58 = arith.constant 0 : index
    %86 = vector.load %arg5[%c6_56, %c0_57, %c0_58] : memref<10x8x512xf32, #tpu.memory_space<vmem>>, vector<1x8x512xf32>
    %87 = vector.shape_cast %86 : vector<1x8x512xf32> to vector<8x512xf32>
    %88 = arith.mulf %85, %87 : vector<8x512xf32>
    %89 = arith.addf %84, %88 : vector<8x512xf32>
    %c496_i32_59 = arith.constant 496 : i32
    %90 = tpu.dynamic_rotate %53 by %c496_i32_59 dim 1 : vector<8x512xf32>, i32 -> vector<8x512xf32>
    %c7_60 = arith.constant 7 : index
    %c0_61 = arith.constant 0 : index
    %c0_62 = arith.constant 0 : index
    %91 = vector.load %arg5[%c7_60, %c0_61, %c0_62] : memref<10x8x512xf32, #tpu.memory_space<vmem>>, vector<1x8x512xf32>
    %92 = vector.shape_cast %91 : vector<1x8x512xf32> to vector<8x512xf32>
    %93 = arith.mulf %90, %92 : vector<8x512xf32>
    %94 = arith.addf %89, %93 : vector<8x512xf32>
    %c495_i32_63 = arith.constant 495 : i32
    %95 = tpu.dynamic_rotate %53 by %c495_i32_63 dim 1 : vector<8x512xf32>, i32 -> vector<8x512xf32>
    %c8_64 = arith.constant 8 : index
    %c0_65 = arith.constant 0 : index
    %c0_66 = arith.constant 0 : index
    %96 = vector.load %arg5[%c8_64, %c0_65, %c0_66] : memref<10x8x512xf32, #tpu.memory_space<vmem>>, vector<1x8x512xf32>
    %97 = vector.shape_cast %96 : vector<1x8x512xf32> to vector<8x512xf32>
    %98 = arith.mulf %95, %97 : vector<8x512xf32>
    %99 = arith.addf %94, %98 : vector<8x512xf32>
    %cst_67 = arith.constant 0.000000e+00 : f32
    %100 = vector.broadcast %cst_67 : f32 to vector<8x512xf32>
    %101 = arith.maximumf %99, %100 : vector<8x512xf32>
    %c0_68 = arith.constant 0 : index
    %c0_69 = arith.constant 0 : index
    %c0_70 = arith.constant 0 : index
    %102 = vector.load %arg6[%c0_68, %c0_69, %c0_70] : memref<1x8x512xf32, #tpu.memory_space<vmem>>, vector<1x8x512xf32>
    %103 = vector.shape_cast %102 : vector<1x8x512xf32> to vector<8x512xf32>
    %104 = vector.shape_cast %101 : vector<8x512xf32> to vector<1x8x512xf32>
    tpu.vector_store %arg6[%c0_68, %c0_69, %c0_70], %104 {strides = array<i32>} : memref<1x8x512xf32, #tpu.memory_space<vmem>>, vector<1x8x512xf32>,
    return
  }
  func.func @transform_0(%arg0: i32) -> (i32, i32, i32) {
    %c0_i32 = arith.constant 0 : i32
    %c0_i32_0 = arith.constant 0 : i32
    %c0_i32_1 = arith.constant 0 : i32
    return %arg0, %c0_i32, %c0_i32_0 : i32, i32, i32
  }
  func.func @transform_1(%arg0: i32) -> (i32, i32) {
    %c0_i32 = arith.constant 0 : i32
    %c0_i32_0 = arith.constant 0 : i32
    %c0_i32_1 = arith.constant 0 : i32
    return %c0_i32, %c0_i32_0 : i32, i32
  }
  func.func @transform_2(%arg0: i32) -> (i32, i32, i32) {
    %c0_i32 = arith.constant 0 : i32
    %c0_i32_0 = arith.constant 0 : i32
    %c0_i32_1 = arith.constant 0 : i32
    %c0_i32_2 = arith.constant 0 : i32
    return %c0_i32, %c0_i32_0, %c0_i32_1 : i32, i32, i32
  }
  func.func @transform_3(%arg0: i32) -> (i32, i32) {
    %c0_i32 = arith.constant 0 : i32
    %c0_i32_0 = arith.constant 0 : i32
    %c0_i32_1 = arith.constant 0 : i32
    return %c0_i32, %c0_i32_0 : i32, i32
  }
  func.func @transform_4(%arg0: i32) -> (i32, i32, i32) {
    %c0_i32 = arith.constant 0 : i32
    %c0_i32_0 = arith.constant 0 : i32
    %c0_i32_1 = arith.constant 0 : i32
    %c0_i32_2 = arith.constant 0 : i32
    return %c0_i32, %c0_i32_0, %c0_i32_1 : i32, i32, i32
  }
  func.func @transform_5(%arg0: i32) -> (i32, i32, i32) {
    %c0_i32 = arith.constant 0 : i32
    %c0_i32_0 = arith.constant 0 : i32
    %c0_i32_1 = arith.constant 0 : i32
    return %arg0, %c0_i32, %c0_i32_0 : i32, i32, i32
  }
}

</mosaic_0001>

<llo_original>
// kernel: tpu_custom_call.1
$region0: #{tpu_custom_call.1}
  #allocation0 [shape = 'u32[]', space=smem, size = 0x4, offset = 0x4, fixed_abs, tag = 'smem constant byte address 0x4 - core index']
  #allocation1 [shape = 'u32[144,128]{1,0:T(1,128)}', space=vmem, size = 0x12000, scoped, tag = 'internal scratch']
  %s0 = inlined_call_operand.hbm [shape: f32[1,4,512], index: 0, kind: input, shape index: {}]
  %s1 = inlined_call_operand.vmem [shape: f32[8,4], index: 1, kind: input, shape index: {}]
  %s2 = inlined_call_operand.hbm [shape: f32[10,8,512], index: 2, kind: input, shape index: {}]
  %s3 = inlined_call_operand.vmem [shape: f32[8,8], index: 3, kind: input, shape index: {}]
  %s4 = inlined_call_operand.hbm [shape: f32[10,8,512], index: 4, kind: input, shape index: {}]
  %s5 = inlined_call_operand.hbm [shape: f32[1,8,512], index: 5, kind: output, shape index: {}]
  %s6 = sld [smem:[#allocation0]]
  $region42: #{tpu_custom_call.1} parent=0
    _
  %s8 = ssub.s32 1, %s6
  %s9 = scalar_select 0, %s8, %s6
  $region1: #{tpu_custom_call.1} parent=0
    #allocation2 [shape = 'u8[8192]{0}', space=vmem, size = 0x2000, scoped, tag = 'input window, operand 0, single buffered']
    #allocation3 [shape = 's32[1]{0}', space=sflag, size = 0x4, scoped, tag = 'scoped memory for tpu_custom_call.1']
    #allocation4 [shape = 's32[1]{0}', space=sflag, size = 0x4, scoped, tag = 'scoped memory for tpu_custom_call.1']
    #allocation5 [shape = 'u8[163840]{0}', space=vmem, size = 0x28000, scoped, tag = 'input window, operand 2, single buffered']
    #allocation6 [shape = 's32[1]{0}', space=sflag, size = 0x4, scoped, tag = 'scoped memory for tpu_custom_call.1']
    #allocation7 [shape = 'u8[163840]{0}', space=vmem, size = 0x28000, scoped, tag = 'input window, operand 4, single buffered']
    #allocation8 [shape = 'u8[16384]{0}', space=vmem, size = 0x4000, scoped, tag = 'output window, operand 0, single buffered']
    %10 = vsyncpa [#allocation3], 0
    %11 = vsyncpa [#allocation6], 0
    %12 = vsyncpa [#allocation4], 0
    // Predicated region
    $region2: #{tpu_custom_call.1} parent=1 // pred_check
      _
    $region3: #{tpu_custom_call.1} parent=1 // pred_check_branch
      %14 = sbr.rel (0) target = $region5
    $region4: #{tpu_custom_call.1} parent=1 // pred_region
      %s16 = ssub.s32 256, 256
      %17 = vsyncadd [#allocation3], %s16
      %s19 = sshll.u32 [#allocation2], 4
      %s20 = int_to_ptr.vmem [resolvable:$true] %s19
      %22 = dma.hbm_to_vmem [thread:$0]  %s0, 256, %s20, [#allocation3]
    $region5: #{tpu_custom_call.1} parent=1 // pred_fallthru
      _
    // Predicated region
    $region6: #{tpu_custom_call.1} parent=1 // pred_check
      _
    $region7: #{tpu_custom_call.1} parent=1 // pred_check_branch
      %24 = sbr.rel (0) target = $region9
    $region8: #{tpu_custom_call.1} parent=1 // pred_region
      _
    $region9: #{tpu_custom_call.1} parent=1 // pred_fallthru
      _
    // Predicated region
    $region10: #{tpu_custom_call.1} parent=1 // pred_check
      _
    $region11: #{tpu_custom_call.1} parent=1 // pred_check_branch
      %26 = sbr.rel (0) target = $region13
    $region12: #{tpu_custom_call.1} parent=1 // pred_region
      %s28 = ssub.s32 5120, 5120
      %29 = vsyncadd [#allocation6], %s28
      %s30 = sshll.u32 [#allocation5], 4
      %s31 = int_to_ptr.vmem [resolvable:$true] %s30
      %36 = dma.hbm_to_vmem [thread:$0]  %s2, 5120, %s31, [#allocation6], 512, 512, 32
    $region13: #{tpu_custom_call.1} parent=1 // pred_fallthru
      _
    // Predicated region
    $region14: #{tpu_custom_call.1} parent=1 // pred_check
      _
    $region15: #{tpu_custom_call.1} parent=1 // pred_check_branch
      %38 = sbr.rel (0) target = $region17
    $region16: #{tpu_custom_call.1} parent=1 // pred_region
      _
    $region17: #{tpu_custom_call.1} parent=1 // pred_fallthru
      _
    // Predicated region
    $region18: #{tpu_custom_call.1} parent=1 // pred_check
      _
    $region19: #{tpu_custom_call.1} parent=1 // pred_check_branch
      %40 = sbr.rel (0) target = $region21
    $region20: #{tpu_custom_call.1} parent=1 // pred_region
      %s42 = ssub.s32 5120, 5120
      %43 = vsyncadd [#allocation6], %s42
      %s44 = sshll.u32 [#allocation7], 4
      %s45 = int_to_ptr.vmem [resolvable:$true] %s44
      %50 = dma.hbm_to_vmem [thread:$0]  %s4, 5120, %s45, [#allocation6], 512, 512, 32
    $region21: #{tpu_custom_call.1} parent=1 // pred_fallthru
      _
    // Predicated region
    $region22: #{tpu_custom_call.1} parent=1 // pred_check
      _
    $region23: #{tpu_custom_call.1} parent=1 // pred_check_branch
      %52 = sbr.rel (0) target = $region25
    $region24: #{tpu_custom_call.1} parent=1 // pred_region
      %53 = dma.done [#allocation3], 256
    $region25: #{tpu_custom_call.1} parent=1 // pred_fallthru
      _
    // Predicated region
    $region26: #{tpu_custom_call.1} parent=1 // pred_check
      _
    $region27: #{tpu_custom_call.1} parent=1 // pred_check_branch
      %55 = sbr.rel (0) target = $region29
    $region28: #{tpu_custom_call.1} parent=1 // pred_region
      %56 = dma.done [#allocation6], 5120
    $region29: #{tpu_custom_call.1} parent=1 // pred_fallthru
      _
    // Predicated region
    $region30: #{tpu_custom_call.1} parent=1 // pred_check
      _
    $region31: #{tpu_custom_call.1} parent=1 // pred_check_branch
      %58 = sbr.rel (0) target = $region33
    $region32: #{tpu_custom_call.1} parent=1 // pred_region
      %59 = dma.done [#allocation6], 5120
    $region33: #{tpu_custom_call.1} parent=1 // pred_fallthru
      _
    %v60 = vld [vmem:[#allocation2] sm:$0xff]
    %v61 = vld [vmem:[#allocation2 + $0x8] sm:$0xff]
    %v62 = vld [vmem:[%s1] sm:$0xff]
    %v65 = vcombine.high %v60, %v60
    %v66 = vcombine.high %v61, %v61
    %vm67 = vcmask 31744
    %v69 = vsel %vm67, %v62, 0
    %vm71 = vcmask 1043456
    %v72 = vsel %vm71, %v60, 0
    %v74 = vsel %vm71, %v65, 0
    %v76 = vsel %vm71, %v61, 0
    %v78 = vsel %vm71, %v66, 0
    %v80 = vand.u32 %v74, 4294901760
    %81 = vmatprep.subr.mxu0 %v80
    %v82 = vand.u32 %v72, 4294901760
    %83 = vmatpush1.msra.mxu0 %v82
    %84 = vmatprep.subr.mxu0 0.0
    %85 = vmatpush1.msra.mxu0 0.0
    %86 = vmatprep.subr.mxu0 0.0
    %87 = vmatpush1.msra.mxu0 0.0
    %88 = vmatprep.subr.mxu0 0.0
    %89 = vmatpush1.msra.mxu0 0.0
    %90 = vmatprep.subr.mxu0 0.0
    %91 = vmatpush1.msra.mxu0 0.0
    %92 = vmatprep.subr.mxu0 0.0
    %93 = vmatpush1.msra.mxu0 0.0
    %94 = vmatprep.subr.mxu0 0.0
    %95 = vmatpush1.msra.mxu0 0.0
    %96 = vmatprep.subr.mxu0 0.0
    %97 = vmatpush1.msra.mxu0 0.0
    %98 = vmatprep.subr.mxu0 0.0
    %99 = vmatpush1.msra.mxu0 0.0
    %100 = vmatprep.subr.mxu0 0.0
    %101 = vmatpush1.msra.mxu0 0.0
    %102 = vmatprep.subr.mxu0 0.0
    %103 = vmatpush1.msra.mxu0 0.0
    %104 = vmatprep.subr.mxu0 0.0
    %105 = vmatpush1.msra.mxu0 0.0
    %106 = vmatprep.subr.mxu0 0.0
    %107 = vmatpush1.msra.mxu0 0.0
    %108 = vmatprep.subr.mxu0 0.0
    %109 = vmatpush1.msra.mxu0 0.0
    %110 = vmatprep.subr.mxu0 0.0
    %111 = vmatpush1.msra.mxu0 0.0
    %112 = vmatprep.subr.mxu0 0.0
    %113 = vmatpush1.msra.mxu0 0.0
    %114 = vmatprep.subr.mxu0 0.0
    %115 = vmatpush1.msra.mxu0 0.0
    %116 = vmatprep.subr.mxu0 0.0
    %117 = vmatpush1.msra.mxu0 0.0
    %118 = vmatprep.subr.mxu0 0.0
    %119 = vmatpush1.msra.mxu0 0.0
    %120 = vmatprep.subr.mxu0 0.0
    %121 = vmatpush1.msra.mxu0 0.0
    %122 = vmatprep.subr.mxu0 0.0
    %123 = vmatpush1.msra.mxu0 0.0
    %124 = vmatprep.subr.mxu0 0.0
    %125 = vmatpush1.msra.mxu0 0.0
    %126 = vmatprep.subr.mxu0 0.0
    %127 = vmatpush1.msra.mxu0 0.0
    %128 = vmatprep.subr.mxu0 0.0
    %129 = vmatpush1.msra.mxu0 0.0
    %130 = vmatprep.subr.mxu0 0.0
    %131 = vmatpush1.msra.mxu0 0.0
    %132 = vmatprep.subr.mxu0 0.0
    %133 = vmatpush1.msra.mxu0 0.0
    %134 = vmatprep.subr.mxu0 0.0
    %135 = vmatpush1.msra.mxu0 0.0
    %136 = vmatprep.subr.mxu0 0.0
    %137 = vmatpush1.msra.mxu0 0.0
    %138 = vmatprep.subr.mxu0 0.0
    %139 = vmatpush1.msra.mxu0 0.0
    %140 = vmatprep.subr.mxu0 0.0
    %141 = vmatpush1.msra.mxu0 0.0
    %142 = vmatprep.subr.mxu0 0.0
    %143 = vmatpush1.msra.mxu0 0.0
    %144 = vmatprep.subr.mxu0 0.0
    %145 = vmatpush1.msra.mxu0 0.0
    %146 = vmatprep.mubr.f32.mxu0 0.0
    %v147 = vand.u32 %v69, 4294901760
    %v148 = vsub.f32 %v69, %v147
    %v149 = vand.u32 %v148, 4294901760
    %v150 = vsub.f32 %v148, %v149
    %v151 = vand.u32 %v150, 4294901760
    %152 = vmatmul.mubr.f32.gmra.mrb[0].mxu0 %v151
    %v153 = vpop.f32.mrb[0].mxu0
    %v154 = vadd.f32 0.0, %v153
    %v155 = vpop.f32.mrb[0].mxu0
    %v156 = vadd.f32 0.0, %v155
    %157 = vdwg.mxu0
    %v158 = vand.u32 %v74, 4294901760
    %v159 = vsub.f32 %v74, %v158
    %v160 = vand.u32 %v159, 4294901760
    %v161 = vsub.f32 %v159, %v160
    %v162 = vand.u32 %v161, 4294901760
    %163 = vmatprep.subr.mxu0 %v162
    %v164 = vand.u32 %v72, 4294901760
    %v165 = vsub.f32 %v72, %v164
    %v166 = vand.u32 %v165, 4294901760
    %v167 = vsub.f32 %v165, %v166
    %v168 = vand.u32 %v167, 4294901760
    %169 = vmatpush1.msra.mxu0 %v168
    %170 = vmatprep.subr.mxu0 0.0
    %171 = vmatpush1.msra.mxu0 0.0
    %172 = vmatprep.subr.mxu0 0.0
    %173 = vmatpush1.msra.mxu0 0.0
    %174 = vmatprep.subr.mxu0 0.0
    %175 = vmatpush1.msra.mxu0 0.0
    %176 = vmatprep.subr.mxu0 0.0
    %177 = vmatpush1.msra.mxu0 0.0
    %178 = vmatprep.subr.mxu0 0.0
    %179 = vmatpush1.msra.mxu0 0.0
    %180 = vmatprep.subr.mxu0 0.0
    %181 = vmatpush1.msra.mxu0 0.0
    %182 = vmatprep.subr.mxu0 0.0
    %183 = vmatpush1.msra.mxu0 0.0
    %184 = vmatprep.subr.mxu0 0.0
    %185 = vmatpush1.msra.mxu0 0.0
    %186 = vmatprep.subr.mxu0 0.0
    %187 = vmatpush1.msra.mxu0 0.0
    %188 = vmatprep.subr.mxu0 0.0
    %189 = vmatpush1.msra.mxu0 0.0
    %190 = vmatprep.subr.mxu0 0.0
    %191 = vmatpush1.msra.mxu0 0.0
    %192 = vmatprep.subr.mxu0 0.0
    %193 = vmatpush1.msra.mxu0 0.0
    %194 = vmatprep.subr.mxu0 0.0
    %195 = vmatpush1.msra.mxu0 0.0
    %196 = vmatprep.subr.mxu0 0.0
    %197 = vmatpush1.msra.mxu0 0.0
    %198 = vmatprep.subr.mxu0 0.0
    %199 = vmatpush1.msra.mxu0 0.0
    %200 = vmatprep.subr.mxu0 0.0
    %201 = vmatpush1.msra.mxu0 0.0
    %202 = vmatprep.subr.mxu0 0.0
    %203 = vmatpush1.msra.mxu0 0.0
    %204 = vmatprep.subr.mxu0 0.0
    %205 = vmatpush1.msra.mxu0 0.0
    %206 = vmatprep.subr.mxu0 0.0
    %207 = vmatpush1.msra.mxu0 0.0
    %208 = vmatprep.subr.mxu0 0.0
    %209 = vmatpush1.msra.mxu0 0.0
    %210 = vmatprep.subr.mxu0 0.0
    %211 = vmatpush1.msra.mxu0 0.0
    %212 = vmatprep.subr.mxu0 0.0
    %213 = vmatpush1.msra.mxu0 0.0
    %214 = vmatprep.subr.mxu0 0.0
    %215 = vmatpush1.msra.mxu0 0.0
    %216 = vmatprep.subr.mxu0 0.0
    %217 = vmatpush1.msra.mxu0 0.0
    %218 = vmatprep.subr.mxu0 0.0
    %219 = vmatpush1.msra.mxu0 0.0
    %220 = vmatprep.subr.mxu0 0.0
    %221 = vmatpush1.msra.mxu0 0.0
    %222 = vmatprep.subr.mxu0 0.0
    %223 = vmatpush1.msra.mxu0 0.0
    %224 = vmatprep.subr.mxu0 0.0
    %225 = vmatpush1.msra.mxu0 0.0
    %226 = vmatprep.subr.mxu0 0.0
    %227 = vmatpush1.msra.mxu0 0.0
    %228 = vmatprep.subr.mxu0 0.0
    %229 = vmatpush1.msra.mxu0 0.0
    %230 = vmatprep.subr.mxu0 0.0
    %231 = vmatpush1.msra.mxu0 0.0
    %232 = vmatprep.mubr.f32.mxu0 0.0
    %v233 = vand.u32 %v69, 4294901760
    %234 = vmatmul.mubr.f32.gmra.mrb[0].mxu0 %v233
    %v235 = vpop.f32.mrb[0].mxu0
    %v236 = vadd.f32 %v154, %v235
    %v237 = vpop.f32.mrb[0].mxu0
    %v238 = vadd.f32 %v156, %v237
    %239 = vdwg.mxu0
    %v240 = vand.u32 %v74, 4294901760
    %v241 = vsub.f32 %v74, %v240
    %242 = vmatprep.subr.mxu0 %v241
    %v243 = vand.u32 %v72, 4294901760
    %v244 = vsub.f32 %v72, %v243
    %245 = vmatpush1.msra.mxu0 %v244
    %246 = vmatprep.subr.mxu0 0.0
    %247 = vmatpush1.msra.mxu0 0.0
    %248 = vmatprep.subr.mxu0 0.0
    %249 = vmatpush1.msra.mxu0 0.0
    %250 = vmatprep.subr.mxu0 0.0
    %251 = vmatpush1.msra.mxu0 0.0
    %252 = vmatprep.subr.mxu0 0.0
    %253 = vmatpush1.msra.mxu0 0.0
    %254 = vmatprep.subr.mxu0 0.0
    %255 = vmatpush1.msra.mxu0 0.0
    %256 = vmatprep.subr.mxu0 0.0
    %257 = vmatpush1.msra.mxu0 0.0
    %258 = vmatprep.subr.mxu0 0.0
    %259 = vmatpush1.msra.mxu0 0.0
    %260 = vmatprep.subr.mxu0 0.0
    %261 = vmatpush1.msra.mxu0 0.0
    %262 = vmatprep.subr.mxu0 0.0
    %263 = vmatpush1.msra.mxu0 0.0
    %264 = vmatprep.subr.mxu0 0.0
    %265 = vmatpush1.msra.mxu0 0.0
    %266 = vmatprep.subr.mxu0 0.0
    %267 = vmatpush1.msra.mxu0 0.0
    %268 = vmatprep.subr.mxu0 0.0
    %269 = vmatpush1.msra.mxu0 0.0
    %270 = vmatprep.subr.mxu0 0.0
    %271 = vmatpush1.msra.mxu0 0.0
    %272 = vmatprep.subr.mxu0 0.0
    %273 = vmatpush1.msra.mxu0 0.0
    %274 = vmatprep.subr.mxu0 0.0
    %275 = vmatpush1.msra.mxu0 0.0
    %276 = vmatprep.subr.mxu0 0.0
    %277 = vmatpush1.msra.mxu0 0.0
    %278 = vmatprep.subr.mxu0 0.0
    %279 = vmatpush1.msra.mxu0 0.0
    %280 = vmatprep.subr.mxu0 0.0
    %281 = vmatpush1.msra.mxu0 0.0
    %282 = vmatprep.subr.mxu0 0.0
    %283 = vmatpush1.msra.mxu0 0.0
    %284 = vmatprep.subr.mxu0 0.0
    %285 = vmatpush1.msra.mxu0 0.0
    %286 = vmatprep.subr.mxu0 0.0
    %287 = vmatpush1.msra.mxu0 0.0
    %288 = vmatprep.subr.mxu0 0.0
    %289 = vmatpush1.msra.mxu0 0.0
    %290 = vmatprep.subr.mxu0 0.0
    %291 = vmatpush1.msra.mxu0 0.0
    %292 = vmatprep.subr.mxu0 0.0
    %293 = vmatpush1.msra.mxu0 0.0
    %294 = vmatprep.subr.mxu0 0.0
    %295 = vmatpush1.msra.mxu0 0.0
    %296 = vmatprep.subr.mxu0 0.0
    %297 = vmatpush1.msra.mxu0 0.0
    %298 = vmatprep.subr.mxu0 0.0
    %299 = vmatpush1.msra.mxu0 0.0
    %300 = vmatprep.subr.mxu0 0.0
    %301 = vmatpush1.msra.mxu0 0.0
    %302 = vmatprep.subr.mxu0 0.0
    %303 = vmatpush1.msra.mxu0 0.0
    %304 = vmatprep.subr.mxu0 0.0
    %305 = vmatpush1.msra.mxu0 0.0
    %306 = vmatprep.subr.mxu0 0.0
    %307 = vmatpush1.msra.mxu0 0.0
    %308 = vmatprep.mubr.f32.mxu0 0.0
    %v309 = vand.u32 %v69, 4294901760
    %v310 = vsub.f32 %v69, %v309
    %311 = vmatmul.mubr.f32.gmra.mrb[0].mxu0 %v310
    %v312 = vpop.f32.mrb[0].mxu0
    %v313 = vadd.f32 %v236, %v312
    %v314 = vpop.f32.mrb[0].mxu0
    %v315 = vadd.f32 %v238, %v314
    %316 = vdwg.mxu0
    %v317 = vand.u32 %v74, 4294901760
    %318 = vmatprep.subr.mxu0 %v317
    %v319 = vand.u32 %v72, 4294901760
    %320 = vmatpush1.msra.mxu0 %v319
    %321 = vmatprep.subr.mxu0 0.0
    %322 = vmatpush1.msra.mxu0 0.0
    %323 = vmatprep.subr.mxu0 0.0
    %324 = vmatpush1.msra.mxu0 0.0
    %325 = vmatprep.subr.mxu0 0.0
    %326 = vmatpush1.msra.mxu0 0.0
    %327 = vmatprep.subr.mxu0 0.0
    %328 = vmatpush1.msra.mxu0 0.0
    %329 = vmatprep.subr.mxu0 0.0
    %330 = vmatpush1.msra.mxu0 0.0
    %331 = vmatprep.subr.mxu0 0.0
    %332 = vmatpush1.msra.mxu0 0.0
    %333 = vmatprep.subr.mxu0 0.0
    %334 = vmatpush1.msra.mxu0 0.0
    %335 = vmatprep.subr.mxu0 0.0
    %336 = vmatpush1.msra.mxu0 0.0
    %337 = vmatprep.subr.mxu0 0.0
    %338 = vmatpush1.msra.mxu0 0.0
    %339 = vmatprep.subr.mxu0 0.0
    %340 = vmatpush1.msra.mxu0 0.0
    %341 = vmatprep.subr.mxu0 0.0
    %342 = vmatpush1.msra.mxu0 0.0
    %343 = vmatprep.subr.mxu0 0.0
    %344 = vmatpush1.msra.mxu0 0.0
    %345 = vmatprep.subr.mxu0 0.0
    %346 = vmatpush1.msra.mxu0 0.0
    %347 = vmatprep.subr.mxu0 0.0
    %348 = vmatpush1.msra.mxu0 0.0
    %349 = vmatprep.subr.mxu0 0.0
    %350 = vmatpush1.msra.mxu0 0.0
    %351 = vmatprep.subr.mxu0 0.0
    %352 = vmatpush1.msra.mxu0 0.0
    %353 = vmatprep.subr.mxu0 0.0
    %354 = vmatpush1.msra.mxu0 0.0
    %355 = vmatprep.subr.mxu0 0.0
    %356 = vmatpush1.msra.mxu0 0.0
    %357 = vmatprep.subr.mxu0 0.0
    %358 = vmatpush1.msra.mxu0 0.0
    %359 = vmatprep.subr.mxu0 0.0
    %360 = vmatpush1.msra.mxu0 0.0
    %361 = vmatprep.subr.mxu0 0.0
    %362 = vmatpush1.msra.mxu0 0.0
    %363 = vmatprep.subr.mxu0 0.0
    %364 = vmatpush1.msra.mxu0 0.0
    %365 = vmatprep.subr.mxu0 0.0
    %366 = vmatpush1.msra.mxu0 0.0
    %367 = vmatprep.subr.mxu0 0.0
    %368 = vmatpush1.msra.mxu0 0.0
    %369 = vmatprep.subr.mxu0 0.0
    %370 = vmatpush1.msra.mxu0 0.0
    %371 = vmatprep.subr.mxu0 0.0
    %372 = vmatpush1.msra.mxu0 0.0
    %373 = vmatprep.subr.mxu0 0.0
    %374 = vmatpush1.msra.mxu0 0.0
    %375 = vmatprep.subr.mxu0 0.0
    %376 = vmatpush1.msra.mxu0 0.0
    %377 = vmatprep.subr.mxu0 0.0
    %378 = vmatpush1.msra.mxu0 0.0
    %379 = vmatprep.subr.mxu0 0.0
    %380 = vmatpush1.msra.mxu0 0.0
    %381 = vmatprep.subr.mxu0 0.0
    %382 = vmatpush1.msra.mxu0 0.0
    %383 = vmatprep.mubr.f32.mxu0 0.0
    %v384 = vand.u32 %v69, 4294901760
    %v385 = vsub.f32 %v69, %v384
    %v386 = vand.u32 %v385, 4294901760
    %387 = vmatmul.mubr.f32.gmra.mrb[0].mxu0 %v386
    %v388 = vpop.f32.mrb[0].mxu0
    %v389 = vadd.f32 %v313, %v388
    %v390 = vpop.f32.mrb[0].mxu0
    %v391 = vadd.f32 %v315, %v390
    %392 = vdwg.mxu0
    %v393 = vand.u32 %v74, 4294901760
    %v394 = vsub.f32 %v74, %v393
    %v395 = vand.u32 %v394, 4294901760
    %396 = vmatprep.subr.mxu0 %v395
    %v397 = vand.u32 %v72, 4294901760
    %v398 = vsub.f32 %v72, %v397
    %v399 = vand.u32 %v398, 4294901760
    %400 = vmatpush1.msra.mxu0 %v399
    %401 = vmatprep.subr.mxu0 0.0
    %402 = vmatpush1.msra.mxu0 0.0
    %403 = vmatprep.subr.mxu0 0.0
    %404 = vmatpush1.msra.mxu0 0.0
    %405 = vmatprep.subr.mxu0 0.0
    %406 = vmatpush1.msra.mxu0 0.0
    %407 = vmatprep.subr.mxu0 0.0
    %408 = vmatpush1.msra.mxu0 0.0
    %409 = vmatprep.subr.mxu0 0.0
    %410 = vmatpush1.msra.mxu0 0.0
    %411 = vmatprep.subr.mxu0 0.0
    %412 = vmatpush1.msra.mxu0 0.0
    %413 = vmatprep.subr.mxu0 0.0
    %414 = vmatpush1.msra.mxu0 0.0
    %415 = vmatprep.subr.mxu0 0.0
    %416 = vmatpush1.msra.mxu0 0.0
    %417 = vmatprep.subr.mxu0 0.0
    %418 = vmatpush1.msra.mxu0 0.0
    %419 = vmatprep.subr.mxu0 0.0
    %420 = vmatpush1.msra.mxu0 0.0
    %421 = vmatprep.subr.mxu0 0.0
    %422 = vmatpush1.msra.mxu0 0.0
    %423 = vmatprep.subr.mxu0 0.0
    %424 = vmatpush1.msra.mxu0 0.0
    %425 = vmatprep.subr.mxu0 0.0
    %426 = vmatpush1.msra.mxu0 0.0
    %427 = vmatprep.subr.mxu0 0.0
    %428 = vmatpush1.msra.mxu0 0.0
    %429 = vmatprep.subr.mxu0 0.0
    %430 = vmatpush1.msra.mxu0 0.0
    %431 = vmatprep.subr.mxu0 0.0
    %432 = vmatpush1.msra.mxu0 0.0
    %433 = vmatprep.subr.mxu0 0.0
    %434 = vmatpush1.msra.mxu0 0.0
    %435 = vmatprep.subr.mxu0 0.0
    %436 = vmatpush1.msra.mxu0 0.0
    %437 = vmatprep.subr.mxu0 0.0
    %438 = vmatpush1.msra.mxu0 0.0
    %439 = vmatprep.subr.mxu0 0.0
    %440 = vmatpush1.msra.mxu0 0.0
    %441 = vmatprep.subr.mxu0 0.0
    %442 = vmatpush1.msra.mxu0 0.0
    %443 = vmatprep.subr.mxu0 0.0
    %444 = vmatpush1.msra.mxu0 0.0
    %445 = vmatprep.subr.mxu0 0.0
    %446 = vmatpush1.msra.mxu0 0.0
    %447 = vmatprep.subr.mxu0 0.0
    %448 = vmatpush1.msra.mxu0 0.0
    %449 = vmatprep.subr.mxu0 0.0
    %450 = vmatpush1.msra.mxu0 0.0
    %451 = vmatprep.subr.mxu0 0.0
    %452 = vmatpush1.msra.mxu0 0.0
    %453 = vmatprep.subr.mxu0 0.0
    %454 = vmatpush1.msra.mxu0 0.0
    %455 = vmatprep.subr.mxu0 0.0
    %456 = vmatpush1.msra.mxu0 0.0
    %457 = vmatprep.subr.mxu0 0.0
    %458 = vmatpush1.msra.mxu0 0.0
    %459 = vmatprep.subr.mxu0 0.0
    %460 = vmatpush1.msra.mxu0 0.0
    %461 = vmatprep.subr.mxu0 0.0
    %462 = vmatpush1.msra.mxu0 0.0
    %463 = vmatprep.mubr.f32.mxu0 0.0
    %v464 = vand.u32 %v69, 4294901760
    %465 = vmatmul.mubr.f32.gmra.mrb[0].mxu0 %v464
    %v466 = vpop.f32.mrb[0].mxu0
    %v467 = vadd.f32 %v389, %v466
    %v468 = vpop.f32.mrb[0].mxu0
    %v469 = vadd.f32 %v391, %v468
    %470 = vdwg.mxu0
    %v471 = vand.u32 %v74, 4294901760
    %472 = vmatprep.subr.mxu0 %v471
    %v473 = vand.u32 %v72, 4294901760
    %474 = vmatpush1.msra.mxu0 %v473
    %475 = vmatprep.subr.mxu0 0.0
    %476 = vmatpush1.msra.mxu0 0.0
    %477 = vmatprep.subr.mxu0 0.0
    %478 = vmatpush1.msra.mxu0 0.0
    %479 = vmatprep.subr.mxu0 0.0
    %480 = vmatpush1.msra.mxu0 0.0
    %481 = vmatprep.subr.mxu0 0.0
    %482 = vmatpush1.msra.mxu0 0.0
    %483 = vmatprep.subr.mxu0 0.0
    %484 = vmatpush1.msra.mxu0 0.0
    %485 = vmatprep.subr.mxu0 0.0
    %486 = vmatpush1.msra.mxu0 0.0
    %487 = vmatprep.subr.mxu0 0.0
    %488 = vmatpush1.msra.mxu0 0.0
    %489 = vmatprep.subr.mxu0 0.0
    %490 = vmatpush1.msra.mxu0 0.0
    %491 = vmatprep.subr.mxu0 0.0
    %492 = vmatpush1.msra.mxu0 0.0
    %493 = vmatprep.subr.mxu0 0.0
    %494 = vmatpush1.msra.mxu0 0.0
    %495 = vmatprep.subr.mxu0 0.0
    %496 = vmatpush1.msra.mxu0 0.0
    %497 = vmatprep.subr.mxu0 0.0
    %498 = vmatpush1.msra.mxu0 0.0
    %499 = vmatprep.subr.mxu0 0.0
    %500 = vmatpush1.msra.mxu0 0.0
    %501 = vmatprep.subr.mxu0 0.0
    %502 = vmatpush1.msra.mxu0 0.0
    %503 = vmatprep.subr.mxu0 0.0
    %504 = vmatpush1.msra.mxu0 0.0
    %505 = vmatprep.subr.mxu0 0.0
    %506 = vmatpush1.msra.mxu0 0.0
    %507 = vmatprep.subr.mxu0 0.0
    %508 = vmatpush1.msra.mxu0 0.0
    %509 = vmatprep.subr.mxu0 0.0
    %510 = vmatpush1.msra.mxu0 0.0
    %511 = vmatprep.subr.mxu0 0.0
    %512 = vmatpush1.msra.mxu0 0.0
    %513 = vmatprep.subr.mxu0 0.0
    %514 = vmatpush1.msra.mxu0 0.0
    %515 = vmatprep.subr.mxu0 0.0
    %516 = vmatpush1.msra.mxu0 0.0
    %517 = vmatprep.subr.mxu0 0.0
    %518 = vmatpush1.msra.mxu0 0.0
    %519 = vmatprep.subr.mxu0 0.0
    %520 = vmatpush1.msra.mxu0 0.0
    %521 = vmatprep.subr.mxu0 0.0
    %522 = vmatpush1.msra.mxu0 0.0
    %523 = vmatprep.subr.mxu0 0.0
    %524 = vmatpush1.msra.mxu0 0.0
    %525 = vmatprep.subr.mxu0 0.0
    %526 = vmatpush1.msra.mxu0 0.0
    %527 = vmatprep.subr.mxu0 0.0
    %528 = vmatpush1.msra.mxu0 0.0
    %529 = vmatprep.subr.mxu0 0.0
    %530 = vmatpush1.msra.mxu0 0.0
    %531 = vmatprep.subr.mxu0 0.0
    %532 = vmatpush1.msra.mxu0 0.0
    %533 = vmatprep.subr.mxu0 0.0
    %534 = vmatpush1.msra.mxu0 0.0
    %535 = vmatprep.subr.mxu0 0.0
    %536 = vmatpush1.msra.mxu0 0.0
    %537 = vmatprep.mubr.f32.mxu0 0.0
    %v538 = vand.u32 %v69, 4294901760
    %539 = vmatmul.mubr.f32.gmra.mrb[0].mxu0 %v538
    %v540 = vpop.f32.mrb[0].mxu0
    %v541 = vadd.f32 %v467, %v540
    %v542 = vpop.f32.mrb[0].mxu0
    %v543 = vadd.f32 %v469, %v542
    %544 = vdwg.mxu0
    %v545 = vand.u32 %v78, 4294901760
    %546 = vmatprep.subr.mxu0 %v545
    %v547 = vand.u32 %v76, 4294901760
    %548 = vmatpush1.msra.mxu0 %v547
    %549 = vmatprep.subr.mxu0 0.0
    %550 = vmatpush1.msra.mxu0 0.0
    %551 = vmatprep.subr.mxu0 0.0
    %552 = vmatpush1.msra.mxu0 0.0
    %553 = vmatprep.subr.mxu0 0.0
    %554 = vmatpush1.msra.mxu0 0.0
    %555 = vmatprep.subr.mxu0 0.0
    %556 = vmatpush1.msra.mxu0 0.0
    %557 = vmatprep.subr.mxu0 0.0
    %558 = vmatpush1.msra.mxu0 0.0
    %559 = vmatprep.subr.mxu0 0.0
    %560 = vmatpush1.msra.mxu0 0.0
    %561 = vmatprep.subr.mxu0 0.0
    %562 = vmatpush1.msra.mxu0 0.0
    %563 = vmatprep.subr.mxu0 0.0
    %564 = vmatpush1.msra.mxu0 0.0
    %565 = vmatprep.subr.mxu0 0.0
    %566 = vmatpush1.msra.mxu0 0.0
    %567 = vmatprep.subr.mxu0 0.0
    %568 = vmatpush1.msra.mxu0 0.0
    %569 = vmatprep.subr.mxu0 0.0
    %570 = vmatpush1.msra.mxu0 0.0
    %571 = vmatprep.subr.mxu0 0.0
    %572 = vmatpush1.msra.mxu0 0.0
    %573 = vmatprep.subr.mxu0 0.0
    %574 = vmatpush1.msra.mxu0 0.0
    %575 = vmatprep.subr.mxu0 0.0
    %576 = vmatpush1.msra.mxu0 0.0
    %577 = vmatprep.subr.mxu0 0.0
    %578 = vmatpush1.msra.mxu0 0.0
    %579 = vmatprep.subr.mxu0 0.0
    %580 = vmatpush1.msra.mxu0 0.0
    %581 = vmatprep.subr.mxu0 0.0
    %582 = vmatpush1.msra.mxu0 0.0
    %583 = vmatprep.subr.mxu0 0.0
    %584 = vmatpush1.msra.mxu0 0.0
    %585 = vmatprep.subr.mxu0 0.0
    %586 = vmatpush1.msra.mxu0 0.0
    %587 = vmatprep.subr.mxu0 0.0
    %588 = vmatpush1.msra.mxu0 0.0
    %589 = vmatprep.subr.mxu0 0.0
    %590 = vmatpush1.msra.mxu0 0.0
    %591 = vmatprep.subr.mxu0 0.0
    %592 = vmatpush1.msra.mxu0 0.0
    %593 = vmatprep.subr.mxu0 0.0
    %594 = vmatpush1.msra.mxu0 0.0
    %595 = vmatprep.subr.mxu0 0.0
    %596 = vmatpush1.msra.mxu0 0.0
    %597 = vmatprep.subr.mxu0 0.0
    %598 = vmatpush1.msra.mxu0 0.0
    %599 = vmatprep.subr.mxu0 0.0
    %600 = vmatpush1.msra.mxu0 0.0
    %601 = vmatprep.subr.mxu0 0.0
    %602 = vmatpush1.msra.mxu0 0.0
    %603 = vmatprep.subr.mxu0 0.0
    %604 = vmatpush1.msra.mxu0 0.0
    %605 = vmatprep.subr.mxu0 0.0
    %606 = vmatpush1.msra.mxu0 0.0
    %607 = vmatprep.subr.mxu0 0.0
    %608 = vmatpush1.msra.mxu0 0.0
    %609 = vmatprep.subr.mxu0 0.0
    %610 = vmatpush1.msra.mxu0 0.0
    %611 = vmatprep.mubr.f32.mxu0 0.0
    %v612 = vand.u32 %v69, 4294901760
    %v613 = vsub.f32 %v69, %v612
    %v614 = vand.u32 %v613, 4294901760
    %v615 = vsub.f32 %v613, %v614
    %v616 = vand.u32 %v615, 4294901760
    %617 = vmatmul.mubr.f32.gmra.mrb[0].mxu0 %v616
    %v618 = vpop.f32.mrb[0].mxu0
    %v619 = vadd.f32 0.0, %v618
    %v620 = vpop.f32.mrb[0].mxu0
    %v621 = vadd.f32 0.0, %v620
    %622 = vdwg.mxu0
    %v623 = vand.u32 %v78, 4294901760
    %v624 = vsub.f32 %v78, %v623
    %v625 = vand.u32 %v624, 4294901760
    %v626 = vsub.f32 %v624, %v625
    %v627 = vand.u32 %v626, 4294901760
    %628 = vmatprep.subr.mxu0 %v627
    %v629 = vand.u32 %v76, 4294901760
    %v630 = vsub.f32 %v76, %v629
    %v631 = vand.u32 %v630, 4294901760
    %v632 = vsub.f32 %v630, %v631
    %v633 = vand.u32 %v632, 4294901760
    %634 = vmatpush1.msra.mxu0 %v633
    %635 = vmatprep.subr.mxu0 0.0
    %636 = vmatpush1.msra.mxu0 0.0
    %637 = vmatprep.subr.mxu0 0.0
    %638 = vmatpush1.msra.mxu0 0.0
    %639 = vmatprep.subr.mxu0 0.0
    %640 = vmatpush1.msra.mxu0 0.0
    %641 = vmatprep.subr.mxu0 0.0
    %642 = vmatpush1.msra.mxu0 0.0
    %643 = vmatprep.subr.mxu0 0.0
    %644 = vmatpush1.msra.mxu0 0.0
    %645 = vmatprep.subr.mxu0 0.0
    %646 = vmatpush1.msra.mxu0 0.0
    %647 = vmatprep.subr.mxu0 0.0
    %648 = vmatpush1.msra.mxu0 0.0
    %649 = vmatprep.subr.mxu0 0.0
    %650 = vmatpush1.msra.mxu0 0.0
    %651 = vmatprep.subr.mxu0 0.0
    %652 = vmatpush1.msra.mxu0 0.0
    %653 = vmatprep.subr.mxu0 0.0
    %654 = vmatpush1.msra.mxu0 0.0
    %655 = vmatprep.subr.mxu0 0.0
    %656 = vmatpush1.msra.mxu0 0.0
    %657 = vmatprep.subr.mxu0 0.0
    %658 = vmatpush1.msra.mxu0 0.0
    %659 = vmatprep.subr.mxu0 0.0
    %660 = vmatpush1.msra.mxu0 0.0
    %661 = vmatprep.subr.mxu0 0.0
    %662 = vmatpush1.msra.mxu0 0.0
    %663 = vmatprep.subr.mxu0 0.0
    %664 = vmatpush1.msra.mxu0 0.0
    %665 = vmatprep.subr.mxu0 0.0
    %666 = vmatpush1.msra.mxu0 0.0
    %667 = vmatprep.subr.mxu0 0.0
    %668 = vmatpush1.msra.mxu0 0.0
    %669 = vmatprep.subr.mxu0 0.0
    %670 = vmatpush1.msra.mxu0 0.0
    %671 = vmatprep.subr.mxu0 0.0
    %672 = vmatpush1.msra.mxu0 0.0
    %673 = vmatprep.subr.mxu0 0.0
    %674 = vmatpush1.msra.mxu0 0.0
    %675 = vmatprep.subr.mxu0 0.0
    %676 = vmatpush1.msra.mxu0 0.0
    %677 = vmatprep.subr.mxu0 0.0
    %678 = vmatpush1.msra.mxu0 0.0
    %679 = vmatprep.subr.mxu0 0.0
    %680 = vmatpush1.msra.mxu0 0.0
    %681 = vmatprep.subr.mxu0 0.0
    %682 = vmatpush1.msra.mxu0 0.0
    %683 = vmatprep.subr.mxu0 0.0
    %684 = vmatpush1.msra.mxu0 0.0
    %685 = vmatprep.subr.mxu0 0.0
    %686 = vmatpush1.msra.mxu0 0.0
    %687 = vmatprep.subr.mxu0 0.0
    %688 = vmatpush1.msra.mxu0 0.0
    %689 = vmatprep.subr.mxu0 0.0
    %690 = vmatpush1.msra.mxu0 0.0
    %691 = vmatprep.subr.mxu0 0.0
    %692 = vmatpush1.msra.mxu0 0.0
    %693 = vmatprep.subr.mxu0 0.0
    %694 = vmatpush1.msra.mxu0 0.0
    %695 = vmatprep.subr.mxu0 0.0
    %696 = vmatpush1.msra.mxu0 0.0
    %697 = vmatprep.mubr.f32.mxu0 0.0
    %v698 = vand.u32 %v69, 4294901760
    %699 = vmatmul.mubr.f32.gmra.mrb[0].mxu0 %v698
    %v700 = vpop.f32.mrb[0].mxu0
    %v701 = vadd.f32 %v619, %v700
    %v702 = vpop.f32.mrb[0].mxu0
    %v703 = vadd.f32 %v621, %v702
    %704 = vdwg.mxu0
    %v705 = vand.u32 %v78, 4294901760
    %v706 = vsub.f32 %v78, %v705
    %707 = vmatprep.subr.mxu0 %v706
    %v708 = vand.u32 %v76, 4294901760
    %v709 = vsub.f32 %v76, %v708
    %710 = vmatpush1.msra.mxu0 %v709
    %711 = vmatprep.subr.mxu0 0.0
    %712 = vmatpush1.msra.mxu0 0.0
    %713 = vmatprep.subr.mxu0 0.0
    %714 = vmatpush1.msra.mxu0 0.0
    %715 = vmatprep.subr.mxu0 0.0
    %716 = vmatpush1.msra.mxu0 0.0
    %717 = vmatprep.subr.mxu0 0.0
    %718 = vmatpush1.msra.mxu0 0.0
    %719 = vmatprep.subr.mxu0 0.0
    %720 = vmatpush1.msra.mxu0 0.0
    %721 = vmatprep.subr.mxu0 0.0
    %722 = vmatpush1.msra.mxu0 0.0
    %723 = vmatprep.subr.mxu0 0.0
    %724 = vmatpush1.msra.mxu0 0.0
    %725 = vmatprep.subr.mxu0 0.0
    %726 = vmatpush1.msra.mxu0 0.0
    %727 = vmatprep.subr.mxu0 0.0
    %728 = vmatpush1.msra.mxu0 0.0
    %729 = vmatprep.subr.mxu0 0.0
    %730 = vmatpush1.msra.mxu0 0.0
    %731 = vmatprep.subr.mxu0 0.0
    %732 = vmatpush1.msra.mxu0 0.0
    %733 = vmatprep.subr.mxu0 0.0
    %734 = vmatpush1.msra.mxu0 0.0
    %735 = vmatprep.subr.mxu0 0.0
    %736 = vmatpush1.msra.mxu0 0.0
    %737 = vmatprep.subr.mxu0 0.0
    %738 = vmatpush1.msra.mxu0 0.0
    %739 = vmatprep.subr.mxu0 0.0
    %740 = vmatpush1.msra.mxu0 0.0
    %741 = vmatprep.subr.mxu0 0.0
    %742 = vmatpush1.msra.mxu0 0.0
    %743 = vmatprep.subr.mxu0 0.0
    %744 = vmatpush1.msra.mxu0 0.0
    %745 = vmatprep.subr.mxu0 0.0
    %746 = vmatpush1.msra.mxu0 0.0
    %747 = vmatprep.subr.mxu0 0.0
    %748 = vmatpush1.msra.mxu0 0.0
    %749 = vmatprep.subr.mxu0 0.0
    %750 = vmatpush1.msra.mxu0 0.0
    %751 = vmatprep.subr.mxu0 0.0
    %752 = vmatpush1.msra.mxu0 0.0
    %753 = vmatprep.subr.mxu0 0.0
    %754 = vmatpush1.msra.mxu0 0.0
    %755 = vmatprep.subr.mxu0 0.0
    %756 = vmatpush1.msra.mxu0 0.0
    %757 = vmatprep.subr.mxu0 0.0
    %758 = vmatpush1.msra.mxu0 0.0
    %759 = vmatprep.subr.mxu0 0.0
    %760 = vmatpush1.msra.mxu0 0.0
    %761 = vmatprep.subr.mxu0 0.0
    %762 = vmatpush1.msra.mxu0 0.0
    %763 = vmatprep.subr.mxu0 0.0
    %764 = vmatpush1.msra.mxu0 0.0
    %765 = vmatprep.subr.mxu0 0.0
    %766 = vmatpush1.msra.mxu0 0.0
    %767 = vmatprep.subr.mxu0 0.0
    %768 = vmatpush1.msra.mxu0 0.0
    %769 = vmatprep.subr.mxu0 0.0
    %770 = vmatpush1.msra.mxu0 0.0
    %771 = vmatprep.subr.mxu0 0.0
    %772 = vmatpush1.msra.mxu0 0.0
    %773 = vmatprep.mubr.f32.mxu0 0.0
    %v774 = vand.u32 %v69, 4294901760
    %v775 = vsub.f32 %v69, %v774
    %776 = vmatmul.mubr.f32.gmra.mrb[0].mxu0 %v775
    %v777 = vpop.f32.mrb[0].mxu0
    %v778 = vadd.f32 %v701, %v777
    %v779 = vpop.f32.mrb[0].mxu0
    %v780 = vadd.f32 %v703, %v779
    %781 = vdwg.mxu0
    %v782 = vand.u32 %v78, 4294901760
    %783 = vmatprep.subr.mxu0 %v782
    %v784 = vand.u32 %v76, 4294901760
    %785 = vmatpush1.msra.mxu0 %v784
    %786 = vmatprep.subr.mxu0 0.0
    %787 = vmatpush1.msra.mxu0 0.0
    %788 = vmatprep.subr.mxu0 0.0
    %789 = vmatpush1.msra.mxu0 0.0
    %790 = vmatprep.subr.mxu0 0.0
    %791 = vmatpush1.msra.mxu0 0.0
    %792 = vmatprep.subr.mxu0 0.0
    %793 = vmatpush1.msra.mxu0 0.0
    %794 = vmatprep.subr.mxu0 0.0
    %795 = vmatpush1.msra.mxu0 0.0
    %796 = vmatprep.subr.mxu0 0.0
    %797 = vmatpush1.msra.mxu0 0.0
    %798 = vmatprep.subr.mxu0 0.0
    %799 = vmatpush1.msra.mxu0 0.0
    %800 = vmatprep.subr.mxu0 0.0
    %801 = vmatpush1.msra.mxu0 0.0
    %802 = vmatprep.subr.mxu0 0.0
    %803 = vmatpush1.msra.mxu0 0.0
    %804 = vmatprep.subr.mxu0 0.0
    %805 = vmatpush1.msra.mxu0 0.0
    %806 = vmatprep.subr.mxu0 0.0
    %807 = vmatpush1.msra.mxu0 0.0
    %808 = vmatprep.subr.mxu0 0.0
    %809 = vmatpush1.msra.mxu0 0.0
    %810 = vmatprep.subr.mxu0 0.0
    %811 = vmatpush1.msra.mxu0 0.0
    %812 = vmatprep.subr.mxu0 0.0
    %813 = vmatpush1.msra.mxu0 0.0
    %814 = vmatprep.subr.mxu0 0.0
    %815 = vmatpush1.msra.mxu0 0.0
    %816 = vmatprep.subr.mxu0 0.0
    %817 = vmatpush1.msra.mxu0 0.0
    %818 = vmatprep.subr.mxu0 0.0
    %819 = vmatpush1.msra.mxu0 0.0
    %820 = vmatprep.subr.mxu0 0.0
    %821 = vmatpush1.msra.mxu0 0.0
    %822 = vmatprep.subr.mxu0 0.0
    %823 = vmatpush1.msra.mxu0 0.0
    %824 = vmatprep.subr.mxu0 0.0
    %825 = vmatpush1.msra.mxu0 0.0
    %826 = vmatprep.subr.mxu0 0.0
    %827 = vmatpush1.msra.mxu0 0.0
    %828 = vmatprep.subr.mxu0 0.0
    %829 = vmatpush1.msra.mxu0 0.0
    %830 = vmatprep.subr.mxu0 0.0
    %831 = vmatpush1.msra.mxu0 0.0
    %832 = vmatprep.subr.mxu0 0.0
    %833 = vmatpush1.msra.mxu0 0.0
    %834 = vmatprep.subr.mxu0 0.0
    %835 = vmatpush1.msra.mxu0 0.0
    %836 = vmatprep.subr.mxu0 0.0
    %837 = vmatpush1.msra.mxu0 0.0
    %838 = vmatprep.subr.mxu0 0.0
    %839 = vmatpush1.msra.mxu0 0.0
    %840 = vmatprep.subr.mxu0 0.0
    %841 = vmatpush1.msra.mxu0 0.0
    %842 = vmatprep.subr.mxu0 0.0
    %843 = vmatpush1.msra.mxu0 0.0
    %844 = vmatprep.subr.mxu0 0.0
    %845 = vmatpush1.msra.mxu0 0.0
    %846 = vmatprep.subr.mxu0 0.0
    %847 = vmatpush1.msra.mxu0 0.0
    %848 = vmatprep.mubr.f32.mxu0 0.0
    %v849 = vand.u32 %v69, 4294901760
    %v850 = vsub.f32 %v69, %v849
    %v851 = vand.u32 %v850, 4294901760
    %852 = vmatmul.mubr.f32.gmra.mrb[0].mxu0 %v851
    %v853 = vpop.f32.mrb[0].mxu0
    %v854 = vadd.f32 %v778, %v853
    %v855 = vpop.f32.mrb[0].mxu0
    %v856 = vadd.f32 %v780, %v855
    %857 = vdwg.mxu0
    %v858 = vand.u32 %v78, 4294901760
    %v859 = vsub.f32 %v78, %v858
    %v860 = vand.u32 %v859, 4294901760
    %861 = vmatprep.subr.mxu0 %v860
    %v862 = vand.u32 %v76, 4294901760
    %v863 = vsub.f32 %v76, %v862
    %v864 = vand.u32 %v863, 4294901760
    %865 = vmatpush1.msra.mxu0 %v864
    %866 = vmatprep.subr.mxu0 0.0
    %867 = vmatpush1.msra.mxu0 0.0
    %868 = vmatprep.subr.mxu0 0.0
    %869 = vmatpush1.msra.mxu0 0.0
    %870 = vmatprep.subr.mxu0 0.0
    %871 = vmatpush1.msra.mxu0 0.0
    %872 = vmatprep.subr.mxu0 0.0
    %873 = vmatpush1.msra.mxu0 0.0
    %874 = vmatprep.subr.mxu0 0.0
    %875 = vmatpush1.msra.mxu0 0.0
    %876 = vmatprep.subr.mxu0 0.0
    %877 = vmatpush1.msra.mxu0 0.0
    %878 = vmatprep.subr.mxu0 0.0
    %879 = vmatpush1.msra.mxu0 0.0
    %880 = vmatprep.subr.mxu0 0.0
    %881 = vmatpush1.msra.mxu0 0.0
    %882 = vmatprep.subr.mxu0 0.0
    %883 = vmatpush1.msra.mxu0 0.0
    %884 = vmatprep.subr.mxu0 0.0
    %885 = vmatpush1.msra.mxu0 0.0
    %886 = vmatprep.subr.mxu0 0.0
    %887 = vmatpush1.msra.mxu0 0.0
    %888 = vmatprep.subr.mxu0 0.0
    %889 = vmatpush1.msra.mxu0 0.0
    %890 = vmatprep.subr.mxu0 0.0
    %891 = vmatpush1.msra.mxu0 0.0
    %892 = vmatprep.subr.mxu0 0.0
    %893 = vmatpush1.msra.mxu0 0.0
    %894 = vmatprep.subr.mxu0 0.0
    %895 = vmatpush1.msra.mxu0 0.0
    %896 = vmatprep.subr.mxu0 0.0
    %897 = vmatpush1.msra.mxu0 0.0
    %898 = vmatprep.subr.mxu0 0.0
    %899 = vmatpush1.msra.mxu0 0.0
    %900 = vmatprep.subr.mxu0 0.0
    %901 = vmatpush1.msra.mxu0 0.0
    %902 = vmatprep.subr.mxu0 0.0
    %903 = vmatpush1.msra.mxu0 0.0
    %904 = vmatprep.subr.mxu0 0.0
    %905 = vmatpush1.msra.mxu0 0.0
    %906 = vmatprep.subr.mxu0 0.0
    %907 = vmatpush1.msra.mxu0 0.0
    %908 = vmatprep.subr.mxu0 0.0
    %909 = vmatpush1.msra.mxu0 0.0
    %910 = vmatprep.subr.mxu0 0.0
    %911 = vmatpush1.msra.mxu0 0.0
    %912 = vmatprep.subr.mxu0 0.0
    %913 = vmatpush1.msra.mxu0 0.0
    %914 = vmatprep.subr.mxu0 0.0
    %915 = vmatpush1.msra.mxu0 0.0
    %916 = vmatprep.subr.mxu0 0.0
    %917 = vmatpush1.msra.mxu0 0.0
    %918 = vmatprep.subr.mxu0 0.0
    %919 = vmatpush1.msra.mxu0 0.0
    %920 = vmatprep.subr.mxu0 0.0
    %921 = vmatpush1.msra.mxu0 0.0
    %922 = vmatprep.subr.mxu0 0.0
    %923 = vmatpush1.msra.mxu0 0.0
    %924 = vmatprep.subr.mxu0 0.0
    %925 = vmatpush1.msra.mxu0 0.0
    %926 = vmatprep.subr.mxu0 0.0
    %927 = vmatpush1.msra.mxu0 0.0
    %928 = vmatprep.mubr.f32.mxu0 0.0
    %v929 = vand.u32 %v69, 4294901760
    %930 = vmatmul.mubr.f32.gmra.mrb[0].mxu0 %v929
    %v931 = vpop.f32.mrb[0].mxu0
    %v932 = vadd.f32 %v854, %v931
    %v933 = vpop.f32.mrb[0].mxu0
    %v934 = vadd.f32 %v856, %v933
    %935 = vdwg.mxu0
    %v936 = vand.u32 %v78, 4294901760
    %937 = vmatprep.subr.mxu0 %v936
    %v938 = vand.u32 %v76, 4294901760
    %939 = vmatpush1.msra.mxu0 %v938
    %940 = vmatprep.subr.mxu0 0.0
    %941 = vmatpush1.msra.mxu0 0.0
    %942 = vmatprep.subr.mxu0 0.0
    %943 = vmatpush1.msra.mxu0 0.0
    %944 = vmatprep.subr.mxu0 0.0
    %945 = vmatpush1.msra.mxu0 0.0
    %946 = vmatprep.subr.mxu0 0.0
    %947 = vmatpush1.msra.mxu0 0.0
    %948 = vmatprep.subr.mxu0 0.0
    %949 = vmatpush1.msra.mxu0 0.0
    %950 = vmatprep.subr.mxu0 0.0
    %951 = vmatpush1.msra.mxu0 0.0
    %952 = vmatprep.subr.mxu0 0.0
    %953 = vmatpush1.msra.mxu0 0.0
    %954 = vmatprep.subr.mxu0 0.0
    %955 = vmatpush1.msra.mxu0 0.0
    %956 = vmatprep.subr.mxu0 0.0
    %957 = vmatpush1.msra.mxu0 0.0
    %958 = vmatprep.subr.mxu0 0.0
    %959 = vmatpush1.msra.mxu0 0.0
    %960 = vmatprep.subr.mxu0 0.0
    %961 = vmatpush1.msra.mxu0 0.0
    %962 = vmatprep.subr.mxu0 0.0
    %963 = vmatpush1.msra.mxu0 0.0
    %964 = vmatprep.subr.mxu0 0.0
    %965 = vmatpush1.msra.mxu0 0.0
    %966 = vmatprep.subr.mxu0 0.0
    %967 = vmatpush1.msra.mxu0 0.0
    %968 = vmatprep.subr.mxu0 0.0
    %969 = vmatpush1.msra.mxu0 0.0
    %970 = vmatprep.subr.mxu0 0.0
    %971 = vmatpush1.msra.mxu0 0.0
    %972 = vmatprep.subr.mxu0 0.0
    %973 = vmatpush1.msra.mxu0 0.0
    %974 = vmatprep.subr.mxu0 0.0
    %975 = vmatpush1.msra.mxu0 0.0
    %976 = vmatprep.subr.mxu0 0.0
    %977 = vmatpush1.msra.mxu0 0.0
    %978 = vmatprep.subr.mxu0 0.0
    %979 = vmatpush1.msra.mxu0 0.0
    %980 = vmatprep.subr.mxu0 0.0
    %981 = vmatpush1.msra.mxu0 0.0
    %982 = vmatprep.subr.mxu0 0.0
    %983 = vmatpush1.msra.mxu0 0.0
    %984 = vmatprep.subr.mxu0 0.0
    %985 = vmatpush1.msra.mxu0 0.0
    %986 = vmatprep.subr.mxu0 0.0
    %987 = vmatpush1.msra.mxu0 0.0
    %988 = vmatprep.subr.mxu0 0.0
    %989 = vmatpush1.msra.mxu0 0.0
    %990 = vmatprep.subr.mxu0 0.0
    %991 = vmatpush1.msra.mxu0 0.0
    %992 = vmatprep.subr.mxu0 0.0
    %993 = vmatpush1.msra.mxu0 0.0
    %994 = vmatprep.subr.mxu0 0.0
    %995 = vmatpush1.msra.mxu0 0.0
    %996 = vmatprep.subr.mxu0 0.0
    %997 = vmatpush1.msra.mxu0 0.0
    %998 = vmatprep.subr.mxu0 0.0
    %999 = vmatpush1.msra.mxu0 0.0
    %1000 = vmatprep.subr.mxu0 0.0
    %1001 = vmatpush1.msra.mxu0 0.0
    %1002 = vmatprep.mubr.f32.mxu0 0.0
    %v1003 = vand.u32 %v69, 4294901760
    %1004 = vmatmul.mubr.f32.gmra.mrb[0].mxu0 %v1003
    %v1005 = vpop.f32.mrb[0].mxu0
    %v1006 = vadd.f32 %v932, %v1005
    %v1007 = vpop.f32.mrb[0].mxu0
    %v1008 = vadd.f32 %v934, %v1007
    %1009 = vdwg.mxu0
    %s1010 = scalar_lea.vmem [#allocation5], 288
    %v1011 = vld [vmem:[%s1010] sm:$0xff]
    %v1012 = vld [vmem:[%s1010 + $0x8] sm:$0xff]
    %v1013 = vld [vmem:[%s1010 + $0x10] sm:$0xff]
    %v1014 = vld [vmem:[%s1010 + $0x18] sm:$0xff]
    %1015 = vrot.lane.b32.xlu0 %v541, 17
    %v1016 = vpop.permute.xlu0 %1015
    %1017 = vrot.lane.b32.xlu0 %v543, 17
    %v1018 = vpop.permute.xlu0 %1017
    %1019 = vrot.lane.b32.xlu0 %v1006, 17
    %v1020 = vpop.permute.xlu0 %1019
    %1021 = vrot.lane.b32.xlu0 %v1008, 17
    %v1022 = vpop.permute.xlu0 %1021
    %v1023 = vlaneseq
    %v1024 = vand.u32 %v1023, 127
    %vm1025 = vcmp.lt.s32.totalorder %v1024, 17
    %v1026 = vsel %vm1025, %v1020, %v1022
    %v1027 = vsel %vm1025, %v1018, %v1020
    %v1028 = vsel %vm1025, %v1016, %v1018
    %v1029 = vsel %vm1025, %v1022, %v1016
    %v1030 = vld [vmem:[#allocation5] sm:$0xff]
    %v1031 = vld [vmem:[#allocation5 + $0x8] sm:$0xff]
    %v1032 = vld [vmem:[#allocation5 + $0x10] sm:$0xff]
    %v1033 = vld [vmem:[#allocation5 + $0x18] sm:$0xff]
    %v1034 = vmul.f32 %v1029, %v1030
    %v1035 = vmul.f32 %v1028, %v1031
    %v1036 = vmul.f32 %v1027, %v1032
    %v1037 = vmul.f32 %v1026, %v1033
    %v1038 = vadd.f32 %v1011, %v1034
    %v1039 = vadd.f32 %v1012, %v1035
    %v1040 = vadd.f32 %v1013, %v1036
    %v1041 = vadd.f32 %v1014, %v1037
    %1042 = vrot.lane.b32.xlu0 %v541, 16
    %v1043 = vpop.permute.xlu0 %1042
    %1044 = vrot.lane.b32.xlu0 %v543, 16
    %v1045 = vpop.permute.xlu0 %1044
    %1046 = vrot.lane.b32.xlu0 %v1006, 16
    %v1047 = vpop.permute.xlu0 %1046
    %1048 = vrot.lane.b32.xlu0 %v1008, 16
    %v1049 = vpop.permute.xlu0 %1048
    %vm1050 = vcmp.lt.s32.totalorder %v1024, 16
    %v1051 = vsel %vm1050, %v1047, %v1049
    %v1052 = vsel %vm1050, %v1045, %v1047
    %v1053 = vsel %vm1050, %v1043, %v1045
    %v1054 = vsel %vm1050, %v1049, %v1043
    %s1055 = scalar_lea.vmem [#allocation5], 32
    %v1056 = vld [vmem:[%s1055] sm:$0xff]
    %v1057 = vld [vmem:[%s1055 + $0x8] sm:$0xff]
    %v1058 = vld [vmem:[%s1055 + $0x10] sm:$0xff]
    %v1059 = vld [vmem:[%s1055 + $0x18] sm:$0xff]
    %v1060 = vmul.f32 %v1054, %v1056
    %v1061 = vmul.f32 %v1053, %v1057
    %v1062 = vmul.f32 %v1052, %v1058
    %v1063 = vmul.f32 %v1051, %v1059
    %v1064 = vadd.f32 %v1038, %v1060
    %v1065 = vadd.f32 %v1039, %v1061
    %v1066 = vadd.f32 %v1040, %v1062
    %v1067 = vadd.f32 %v1041, %v1063
    %1068 = vrot.lane.b32.xlu0 %v541, 15
    %v1069 = vpop.permute.xlu0 %1068
    %1070 = vrot.lane.b32.xlu0 %v543, 15
    %v1071 = vpop.permute.xlu0 %1070
    %1072 = vrot.lane.b32.xlu0 %v1006, 15
    %v1073 = vpop.permute.xlu0 %1072
    %1074 = vrot.lane.b32.xlu0 %v1008, 15
    %v1075 = vpop.permute.xlu0 %1074
    %vm1076 = vcmp.lt.s32.totalorder %v1024, 15
    %v1077 = vsel %vm1076, %v1073, %v1075
    %v1078 = vsel %vm1076, %v1071, %v1073
    %v1079 = vsel %vm1076, %v1069, %v1071
    %v1080 = vsel %vm1076, %v1075, %v1069
    %s1081 = scalar_lea.vmem [#allocation5], 64
    %v1082 = vld [vmem:[%s1081] sm:$0xff]
    %v1083 = vld [vmem:[%s1081 + $0x8] sm:$0xff]
    %v1084 = vld [vmem:[%s1081 + $0x10] sm:$0xff]
    %v1085 = vld [vmem:[%s1081 + $0x18] sm:$0xff]
    %v1086 = vmul.f32 %v1080, %v1082
    %v1087 = vmul.f32 %v1079, %v1083
    %v1088 = vmul.f32 %v1078, %v1084
    %v1089 = vmul.f32 %v1077, %v1085
    %v1090 = vadd.f32 %v1064, %v1086
    %v1091 = vadd.f32 %v1065, %v1087
    %v1092 = vadd.f32 %v1066, %v1088
    %v1093 = vadd.f32 %v1067, %v1089
    %1094 = vrot.lane.b32.xlu0 %v541, 1
    %v1095 = vpop.permute.xlu0 %1094
    %1096 = vrot.lane.b32.xlu0 %v543, 1
    %v1097 = vpop.permute.xlu0 %1096
    %1098 = vrot.lane.b32.xlu0 %v1006, 1
    %v1099 = vpop.permute.xlu0 %1098
    %1100 = vrot.lane.b32.xlu0 %v1008, 1
    %v1101 = vpop.permute.xlu0 %1100
    %vm1102 = vcmp.lt.s32.totalorder %v1024, 1
    %v1103 = vsel %vm1102, %v1099, %v1101
    %v1104 = vsel %vm1102, %v1097, %v1099
    %v1105 = vsel %vm1102, %v1095, %v1097
    %v1106 = vsel %vm1102, %v1101, %v1095
    %s1107 = scalar_lea.vmem [#allocation5], 96
    %v1108 = vld [vmem:[%s1107] sm:$0xff]
    %v1109 = vld [vmem:[%s1107 + $0x8] sm:$0xff]
    %v1110 = vld [vmem:[%s1107 + $0x10] sm:$0xff]
    %v1111 = vld [vmem:[%s1107 + $0x18] sm:$0xff]
    %v1112 = vmul.f32 %v1106, %v1108
    %v1113 = vmul.f32 %v1105, %v1109
    %v1114 = vmul.f32 %v1104, %v1110
    %v1115 = vmul.f32 %v1103, %v1111
    %v1116 = vadd.f32 %v1090, %v1112
    %v1117 = vadd.f32 %v1091, %v1113
    %v1118 = vadd.f32 %v1092, %v1114
    %v1119 = vadd.f32 %v1093, %v1115
    %s1120 = scalar_lea.vmem [#allocation5], 128
    %v1121 = vld [vmem:[%s1120] sm:$0xff]
    %v1122 = vld [vmem:[%s1120 + $0x8] sm:$0xff]
    %v1123 = vld [vmem:[%s1120 + $0x10] sm:$0xff]
    %v1124 = vld [vmem:[%s1120 + $0x18] sm:$0xff]
    %v1125 = vmul.f32 %v541, %v1121
    %v1126 = vmul.f32 %v543, %v1122
    %v1127 = vmul.f32 %v1006, %v1123
    %v1128 = vmul.f32 %v1008, %v1124
    %v1129 = vadd.f32 %v1116, %v1125
    %v1130 = vadd.f32 %v1117, %v1126
    %v1131 = vadd.f32 %v1118, %v1127
    %v1132 = vadd.f32 %v1119, %v1128
    %1133 = vrot.lane.b32.xlu0 %v541, 127
    %v1134 = vpop.permute.xlu0 %1133
    %1135 = vrot.lane.b32.xlu0 %v543, 127
    %v1136 = vpop.permute.xlu0 %1135
    %1137 = vrot.lane.b32.xlu0 %v1006, 127
    %v1138 = vpop.permute.xlu0 %1137
    %1139 = vrot.lane.b32.xlu0 %v1008, 127
    %v1140 = vpop.permute.xlu0 %1139
    %vm1141 = vcmp.lt.s32.totalorder %v1024, 127
    %v1142 = vsel %vm1141, %v1138, %v1140
    %v1143 = vsel %vm1141, %v1136, %v1138
    %v1144 = vsel %vm1141, %v1134, %v1136
    %v1145 = vsel %vm1141, %v1140, %v1134
    %s1146 = scalar_lea.vmem [#allocation5], 160
    %v1147 = vld [vmem:[%s1146] sm:$0xff]
    %v1148 = vld [vmem:[%s1146 + $0x8] sm:$0xff]
    %v1149 = vld [vmem:[%s1146 + $0x10] sm:$0xff]
    %v1150 = vld [vmem:[%s1146 + $0x18] sm:$0xff]
    %v1151 = vmul.f32 %v1144, %v1147
    %v1152 = vmul.f32 %v1143, %v1148
    %v1153 = vmul.f32 %v1142, %v1149
    %v1154 = vmul.f32 %v1145, %v1150
    %v1155 = vadd.f32 %v1129, %v1151
    %v1156 = vadd.f32 %v1130, %v1152
    %v1157 = vadd.f32 %v1131, %v1153
    %v1158 = vadd.f32 %v1132, %v1154
    %1159 = vrot.lane.b32.xlu0 %v541, 113
    %v1160 = vpop.permute.xlu0 %1159
    %1161 = vrot.lane.b32.xlu0 %v543, 113
    %v1162 = vpop.permute.xlu0 %1161
    %1163 = vrot.lane.b32.xlu0 %v1006, 113
    %v1164 = vpop.permute.xlu0 %1163
    %1165 = vrot.lane.b32.xlu0 %v1008, 113
    %v1166 = vpop.permute.xlu0 %1165
    %vm1167 = vcmp.lt.s32.totalorder %v1024, 113
    %v1168 = vsel %vm1167, %v1164, %v1166
    %v1169 = vsel %vm1167, %v1162, %v1164
    %v1170 = vsel %vm1167, %v1160, %v1162
    %v1171 = vsel %vm1167, %v1166, %v1160
    %s1172 = scalar_lea.vmem [#allocation5], 192
    %v1173 = vld [vmem:[%s1172] sm:$0xff]
    %v1174 = vld [vmem:[%s1172 + $0x8] sm:$0xff]
    %v1175 = vld [vmem:[%s1172 + $0x10] sm:$0xff]
    %v1176 = vld [vmem:[%s1172 + $0x18] sm:$0xff]
    %v1177 = vmul.f32 %v1170, %v1173
    %v1178 = vmul.f32 %v1169, %v1174
    %v1179 = vmul.f32 %v1168, %v1175
    %v1180 = vmul.f32 %v1171, %v1176
    %v1181 = vadd.f32 %v1155, %v1177
    %v1182 = vadd.f32 %v1156, %v1178
    %v1183 = vadd.f32 %v1157, %v1179
    %v1184 = vadd.f32 %v1158, %v1180
    %1185 = vrot.lane.b32.xlu0 %v541, 112
    %v1186 = vpop.permute.xlu0 %1185
    %1187 = vrot.lane.b32.xlu0 %v543, 112
    %v1188 = vpop.permute.xlu0 %1187
    %1189 = vrot.lane.b32.xlu0 %v1006, 112
    %v1190 = vpop.permute.xlu0 %1189
    %1191 = vrot.lane.b32.xlu0 %v1008, 112
    %v1192 = vpop.permute.xlu0 %1191
    %vm1193 = vcmp.lt.s32.totalorder %v1024, 112
    %v1194 = vsel %vm1193, %v1190, %v1192
    %v1195 = vsel %vm1193, %v1188, %v1190
    %v1196 = vsel %vm1193, %v1186, %v1188
    %v1197 = vsel %vm1193, %v1192, %v1186
    %s1198 = scalar_lea.vmem [#allocation5], 224
    %v1199 = vld [vmem:[%s1198] sm:$0xff]
    %v1200 = vld [vmem:[%s1198 + $0x8] sm:$0xff]
    %v1201 = vld [vmem:[%s1198 + $0x10] sm:$0xff]
    %v1202 = vld [vmem:[%s1198 + $0x18] sm:$0xff]
    %v1203 = vmul.f32 %v1196, %v1199
    %v1204 = vmul.f32 %v1195, %v1200
    %v1205 = vmul.f32 %v1194, %v1201
    %v1206 = vmul.f32 %v1197, %v1202
    %v1207 = vadd.f32 %v1181, %v1203
    %v1208 = vadd.f32 %v1182, %v1204
    %v1209 = vadd.f32 %v1183, %v1205
    %v1210 = vadd.f32 %v1184, %v1206
    %1211 = vrot.lane.b32.xlu0 %v541, 111
    %v1212 = vpop.permute.xlu0 %1211
    %1213 = vrot.lane.b32.xlu0 %v543, 111
    %v1214 = vpop.permute.xlu0 %1213
    %1215 = vrot.lane.b32.xlu0 %v1006, 111
    %v1216 = vpop.permute.xlu0 %1215
    %1217 = vrot.lane.b32.xlu0 %v1008, 111
    %v1218 = vpop.permute.xlu0 %1217
    %vm1219 = vcmp.lt.s32.totalorder %v1024, 111
    %v1220 = vsel %vm1219, %v1216, %v1218
    %v1221 = vsel %vm1219, %v1214, %v1216
    %v1222 = vsel %vm1219, %v1212, %v1214
    %v1223 = vsel %vm1219, %v1218, %v1212
    %s1224 = scalar_lea.vmem [#allocation5], 256
    %v1225 = vld [vmem:[%s1224] sm:$0xff]
    %v1226 = vld [vmem:[%s1224 + $0x8] sm:$0xff]
    %v1227 = vld [vmem:[%s1224 + $0x10] sm:$0xff]
    %v1228 = vld [vmem:[%s1224 + $0x18] sm:$0xff]
    %v1229 = vmul.f32 %v1222, %v1225
    %v1230 = vmul.f32 %v1221, %v1226
    %v1231 = vmul.f32 %v1220, %v1227
    %v1232 = vmul.f32 %v1223, %v1228
    %v1233 = vadd.f32 %v1207, %v1229
    %v1234 = vadd.f32 %v1208, %v1230
    %v1235 = vadd.f32 %v1209, %v1231
    %v1236 = vadd.f32 %v1210, %v1232
    %v1237 = vmax.f32 %v1233, 0.0
    %v1238 = vmax.f32 %v1234, 0.0
    %v1239 = vmax.f32 %v1235, 0.0
    %v1240 = vmax.f32 %v1236, 0.0
    %v1241 = vld [vmem:[%s3] sm:$0xff]
    %vm1242 = vcmask 64512
    %v1244 = vsel %vm1242, %v1241, 0
    %v1246 = vand.u32 %v1238, 4294901760
    %1247 = vmatprep.subr.mxu0 %v1246
    %v1248 = vand.u32 %v1237, 4294901760
    %1249 = vmatpush1.msra.mxu0 %v1248
    %1250 = vmatprep.subr.mxu0 0.0
    %1251 = vmatpush1.msra.mxu0 0.0
    %1252 = vmatprep.subr.mxu0 0.0
    %1253 = vmatpush1.msra.mxu0 0.0
    %1254 = vmatprep.subr.mxu0 0.0
    %1255 = vmatpush1.msra.mxu0 0.0
    %1256 = vmatprep.subr.mxu0 0.0
    %1257 = vmatpush1.msra.mxu0 0.0
    %1258 = vmatprep.subr.mxu0 0.0
    %1259 = vmatpush1.msra.mxu0 0.0
    %1260 = vmatprep.subr.mxu0 0.0
    %1261 = vmatpush1.msra.mxu0 0.0
    %1262 = vmatprep.subr.mxu0 0.0
    %1263 = vmatpush1.msra.mxu0 0.0
    %1264 = vmatprep.subr.mxu0 0.0
    %1265 = vmatpush1.msra.mxu0 0.0
    %1266 = vmatprep.subr.mxu0 0.0
    %1267 = vmatpush1.msra.mxu0 0.0
    %1268 = vmatprep.subr.mxu0 0.0
    %1269 = vmatpush1.msra.mxu0 0.0
    %1270 = vmatprep.subr.mxu0 0.0
    %1271 = vmatpush1.msra.mxu0 0.0
    %1272 = vmatprep.subr.mxu0 0.0
    %1273 = vmatpush1.msra.mxu0 0.0
    %1274 = vmatprep.subr.mxu0 0.0
    %1275 = vmatpush1.msra.mxu0 0.0
    %1276 = vmatprep.subr.mxu0 0.0
    %1277 = vmatpush1.msra.mxu0 0.0
    %1278 = vmatprep.subr.mxu0 0.0
    %1279 = vmatpush1.msra.mxu0 0.0
    %1280 = vmatprep.subr.mxu0 0.0
    %1281 = vmatpush1.msra.mxu0 0.0
    %1282 = vmatprep.subr.mxu0 0.0
    %1283 = vmatpush1.msra.mxu0 0.0
    %1284 = vmatprep.subr.mxu0 0.0
    %1285 = vmatpush1.msra.mxu0 0.0
    %1286 = vmatprep.subr.mxu0 0.0
    %1287 = vmatpush1.msra.mxu0 0.0
    %1288 = vmatprep.subr.mxu0 0.0
    %1289 = vmatpush1.msra.mxu0 0.0
    %1290 = vmatprep.subr.mxu0 0.0
    %1291 = vmatpush1.msra.mxu0 0.0
    %1292 = vmatprep.subr.mxu0 0.0
    %1293 = vmatpush1.msra.mxu0 0.0
    %1294 = vmatprep.subr.mxu0 0.0
    %1295 = vmatpush1.msra.mxu0 0.0
    %1296 = vmatprep.subr.mxu0 0.0
    %1297 = vmatpush1.msra.mxu0 0.0
    %1298 = vmatprep.subr.mxu0 0.0
    %1299 = vmatpush1.msra.mxu0 0.0
    %1300 = vmatprep.subr.mxu0 0.0
    %1301 = vmatpush1.msra.mxu0 0.0
    %1302 = vmatprep.subr.mxu0 0.0
    %1303 = vmatpush1.msra.mxu0 0.0
    %1304 = vmatprep.subr.mxu0 0.0
    %1305 = vmatpush1.msra.mxu0 0.0
    %1306 = vmatprep.subr.mxu0 0.0
    %1307 = vmatpush1.msra.mxu0 0.0
    %1308 = vmatprep.subr.mxu0 0.0
    %1309 = vmatpush1.msra.mxu0 0.0
    %1310 = vmatprep.subr.mxu0 0.0
    %1311 = vmatpush1.msra.mxu0 0.0
    %1312 = vmatprep.mubr.f32.mxu0 0.0
    %v1313 = vand.u32 %v1244, 4294901760
    %v1314 = vsub.f32 %v1244, %v1313
    %v1315 = vand.u32 %v1314, 4294901760
    %v1316 = vsub.f32 %v1314, %v1315
    %v1317 = vand.u32 %v1316, 4294901760
    %1318 = vmatmul.mubr.f32.gmra.mrb[0].mxu0 %v1317
    %v1319 = vpop.f32.mrb[0].mxu0
    %v1320 = vadd.f32 0.0, %v1319
    %v1321 = vpop.f32.mrb[0].mxu0
    %v1322 = vadd.f32 0.0, %v1321
    %1323 = vdwg.mxu0
    %v1324 = vand.u32 %v1238, 4294901760
    %v1325 = vsub.f32 %v1238, %v1324
    %v1326 = vand.u32 %v1325, 4294901760
    %v1327 = vsub.f32 %v1325, %v1326
    %v1328 = vand.u32 %v1327, 4294901760
    %1329 = vmatprep.subr.mxu0 %v1328
    %v1330 = vand.u32 %v1237, 4294901760
    %v1331 = vsub.f32 %v1237, %v1330
    %v1332 = vand.u32 %v1331, 4294901760
    %v1333 = vsub.f32 %v1331, %v1332
    %v1334 = vand.u32 %v1333, 4294901760
    %1335 = vmatpush1.msra.mxu0 %v1334
    %1336 = vmatprep.subr.mxu0 0.0
    %1337 = vmatpush1.msra.mxu0 0.0
    %1338 = vmatprep.subr.mxu0 0.0
    %1339 = vmatpush1.msra.mxu0 0.0
    %1340 = vmatprep.subr.mxu0 0.0
    %1341 = vmatpush1.msra.mxu0 0.0
    %1342 = vmatprep.subr.mxu0 0.0
    %1343 = vmatpush1.msra.mxu0 0.0
    %1344 = vmatprep.subr.mxu0 0.0
    %1345 = vmatpush1.msra.mxu0 0.0
    %1346 = vmatprep.subr.mxu0 0.0
    %1347 = vmatpush1.msra.mxu0 0.0
    %1348 = vmatprep.subr.mxu0 0.0
    %1349 = vmatpush1.msra.mxu0 0.0
    %1350 = vmatprep.subr.mxu0 0.0
    %1351 = vmatpush1.msra.mxu0 0.0
    %1352 = vmatprep.subr.mxu0 0.0
    %1353 = vmatpush1.msra.mxu0 0.0
    %1354 = vmatprep.subr.mxu0 0.0
    %1355 = vmatpush1.msra.mxu0 0.0
    %1356 = vmatprep.subr.mxu0 0.0
    %1357 = vmatpush1.msra.mxu0 0.0
    %1358 = vmatprep.subr.mxu0 0.0
    %1359 = vmatpush1.msra.mxu0 0.0
    %1360 = vmatprep.subr.mxu0 0.0
    %1361 = vmatpush1.msra.mxu0 0.0
    %1362 = vmatprep.subr.mxu0 0.0
    %1363 = vmatpush1.msra.mxu0 0.0
    %1364 = vmatprep.subr.mxu0 0.0
    %1365 = vmatpush1.msra.mxu0 0.0
    %1366 = vmatprep.subr.mxu0 0.0
    %1367 = vmatpush1.msra.mxu0 0.0
    %1368 = vmatprep.subr.mxu0 0.0
    %1369 = vmatpush1.msra.mxu0 0.0
    %1370 = vmatprep.subr.mxu0 0.0
    %1371 = vmatpush1.msra.mxu0 0.0
    %1372 = vmatprep.subr.mxu0 0.0
    %1373 = vmatpush1.msra.mxu0 0.0
    %1374 = vmatprep.subr.mxu0 0.0
    %1375 = vmatpush1.msra.mxu0 0.0
    %1376 = vmatprep.subr.mxu0 0.0
    %1377 = vmatpush1.msra.mxu0 0.0
    %1378 = vmatprep.subr.mxu0 0.0
    %1379 = vmatpush1.msra.mxu0 0.0
    %1380 = vmatprep.subr.mxu0 0.0
    %1381 = vmatpush1.msra.mxu0 0.0
    %1382 = vmatprep.subr.mxu0 0.0
    %1383 = vmatpush1.msra.mxu0 0.0
    %1384 = vmatprep.subr.mxu0 0.0
    %1385 = vmatpush1.msra.mxu0 0.0
    %1386 = vmatprep.subr.mxu0 0.0
    %1387 = vmatpush1.msra.mxu0 0.0
    %1388 = vmatprep.subr.mxu0 0.0
    %1389 = vmatpush1.msra.mxu0 0.0
    %1390 = vmatprep.subr.mxu0 0.0
    %1391 = vmatpush1.msra.mxu0 0.0
    %1392 = vmatprep.subr.mxu0 0.0
    %1393 = vmatpush1.msra.mxu0 0.0
    %1394 = vmatprep.subr.mxu0 0.0
    %1395 = vmatpush1.msra.mxu0 0.0
    %1396 = vmatprep.subr.mxu0 0.0
    %1397 = vmatpush1.msra.mxu0 0.0
    %1398 = vmatprep.mubr.f32.mxu0 0.0
    %v1399 = vand.u32 %v1244, 4294901760
    %1400 = vmatmul.mubr.f32.gmra.mrb[0].mxu0 %v1399
    %v1401 = vpop.f32.mrb[0].mxu0
    %v1402 = vadd.f32 %v1320, %v1401
    %v1403 = vpop.f32.mrb[0].mxu0
    %v1404 = vadd.f32 %v1322, %v1403
    %1405 = vdwg.mxu0
    %v1406 = vand.u32 %v1238, 4294901760
    %v1407 = vsub.f32 %v1238, %v1406
    %1408 = vmatprep.subr.mxu0 %v1407
    %v1409 = vand.u32 %v1237, 4294901760
    %v1410 = vsub.f32 %v1237, %v1409
    %1411 = vmatpush1.msra.mxu0 %v1410
    %1412 = vmatprep.subr.mxu0 0.0
    %1413 = vmatpush1.msra.mxu0 0.0
    %1414 = vmatprep.subr.mxu0 0.0
    %1415 = vmatpush1.msra.mxu0 0.0
    %1416 = vmatprep.subr.mxu0 0.0
    %1417 = vmatpush1.msra.mxu0 0.0
    %1418 = vmatprep.subr.mxu0 0.0
    %1419 = vmatpush1.msra.mxu0 0.0
    %1420 = vmatprep.subr.mxu0 0.0
    %1421 = vmatpush1.msra.mxu0 0.0
    %1422 = vmatprep.subr.mxu0 0.0
    %1423 = vmatpush1.msra.mxu0 0.0
    %1424 = vmatprep.subr.mxu0 0.0
    %1425 = vmatpush1.msra.mxu0 0.0
    %1426 = vmatprep.subr.mxu0 0.0
    %1427 = vmatpush1.msra.mxu0 0.0
    %1428 = vmatprep.subr.mxu0 0.0
    %1429 = vmatpush1.msra.mxu0 0.0
    %1430 = vmatprep.subr.mxu0 0.0
    %1431 = vmatpush1.msra.mxu0 0.0
    %1432 = vmatprep.subr.mxu0 0.0
    %1433 = vmatpush1.msra.mxu0 0.0
    %1434 = vmatprep.subr.mxu0 0.0
    %1435 = vmatpush1.msra.mxu0 0.0
    %1436 = vmatprep.subr.mxu0 0.0
    %1437 = vmatpush1.msra.mxu0 0.0
    %1438 = vmatprep.subr.mxu0 0.0
    %1439 = vmatpush1.msra.mxu0 0.0
    %1440 = vmatprep.subr.mxu0 0.0
    %1441 = vmatpush1.msra.mxu0 0.0
    %1442 = vmatprep.subr.mxu0 0.0
    %1443 = vmatpush1.msra.mxu0 0.0
    %1444 = vmatprep.subr.mxu0 0.0
    %1445 = vmatpush1.msra.mxu0 0.0
    %1446 = vmatprep.subr.mxu0 0.0
    %1447 = vmatpush1.msra.mxu0 0.0
    %1448 = vmatprep.subr.mxu0 0.0
    %1449 = vmatpush1.msra.mxu0 0.0
    %1450 = vmatprep.subr.mxu0 0.0
    %1451 = vmatpush1.msra.mxu0 0.0
    %1452 = vmatprep.subr.mxu0 0.0
    %1453 = vmatpush1.msra.mxu0 0.0
    %1454 = vmatprep.subr.mxu0 0.0
    %1455 = vmatpush1.msra.mxu0 0.0
    %1456 = vmatprep.subr.mxu0 0.0
    %1457 = vmatpush1.msra.mxu0 0.0
    %1458 = vmatprep.subr.mxu0 0.0
    %1459 = vmatpush1.msra.mxu0 0.0
    %1460 = vmatprep.subr.mxu0 0.0
    %1461 = vmatpush1.msra.mxu0 0.0
    %1462 = vmatprep.subr.mxu0 0.0
    %1463 = vmatpush1.msra.mxu0 0.0
    %1464 = vmatprep.subr.mxu0 0.0
    %1465 = vmatpush1.msra.mxu0 0.0
    %1466 = vmatprep.subr.mxu0 0.0
    %1467 = vmatpush1.msra.mxu0 0.0
    %1468 = vmatprep.subr.mxu0 0.0
    %1469 = vmatpush1.msra.mxu0 0.0
    %1470 = vmatprep.subr.mxu0 0.0
    %1471 = vmatpush1.msra.mxu0 0.0
    %1472 = vmatprep.subr.mxu0 0.0
    %1473 = vmatpush1.msra.mxu0 0.0
    %1474 = vmatprep.mubr.f32.mxu0 0.0
    %v1475 = vand.u32 %v1244, 4294901760
    %v1476 = vsub.f32 %v1244, %v1475
    %1477 = vmatmul.mubr.f32.gmra.mrb[0].mxu0 %v1476
    %v1478 = vpop.f32.mrb[0].mxu0
    %v1479 = vadd.f32 %v1402, %v1478
    %v1480 = vpop.f32.mrb[0].mxu0
    %v1481 = vadd.f32 %v1404, %v1480
    %1482 = vdwg.mxu0
    %v1483 = vand.u32 %v1238, 4294901760
    %1484 = vmatprep.subr.mxu0 %v1483
    %v1485 = vand.u32 %v1237, 4294901760
    %1486 = vmatpush1.msra.mxu0 %v1485
    %1487 = vmatprep.subr.mxu0 0.0
    %1488 = vmatpush1.msra.mxu0 0.0
    %1489 = vmatprep.subr.mxu0 0.0
    %1490 = vmatpush1.msra.mxu0 0.0
    %1491 = vmatprep.subr.mxu0 0.0
    %1492 = vmatpush1.msra.mxu0 0.0
    %1493 = vmatprep.subr.mxu0 0.0
    %1494 = vmatpush1.msra.mxu0 0.0
    %1495 = vmatprep.subr.mxu0 0.0
    %1496 = vmatpush1.msra.mxu0 0.0
    %1497 = vmatprep.subr.mxu0 0.0
    %1498 = vmatpush1.msra.mxu0 0.0
    %1499 = vmatprep.subr.mxu0 0.0
    %1500 = vmatpush1.msra.mxu0 0.0
    %1501 = vmatprep.subr.mxu0 0.0
    %1502 = vmatpush1.msra.mxu0 0.0
    %1503 = vmatprep.subr.mxu0 0.0
    %1504 = vmatpush1.msra.mxu0 0.0
    %1505 = vmatprep.subr.mxu0 0.0
    %1506 = vmatpush1.msra.mxu0 0.0
    %1507 = vmatprep.subr.mxu0 0.0
    %1508 = vmatpush1.msra.mxu0 0.0
    %1509 = vmatprep.subr.mxu0 0.0
    %1510 = vmatpush1.msra.mxu0 0.0
    %1511 = vmatprep.subr.mxu0 0.0
    %1512 = vmatpush1.msra.mxu0 0.0
    %1513 = vmatprep.subr.mxu0 0.0
    %1514 = vmatpush1.msra.mxu0 0.0
    %1515 = vmatprep.subr.mxu0 0.0
    %1516 = vmatpush1.msra.mxu0 0.0
    %1517 = vmatprep.subr.mxu0 0.0
    %1518 = vmatpush1.msra.mxu0 0.0
    %1519 = vmatprep.subr.mxu0 0.0
    %1520 = vmatpush1.msra.mxu0 0.0
    %1521 = vmatprep.subr.mxu0 0.0
    %1522 = vmatpush1.msra.mxu0 0.0
    %1523 = vmatprep.subr.mxu0 0.0
    %1524 = vmatpush1.msra.mxu0 0.0
    %1525 = vmatprep.subr.mxu0 0.0
    %1526 = vmatpush1.msra.mxu0 0.0
    %1527 = vmatprep.subr.mxu0 0.0
    %1528 = vmatpush1.msra.mxu0 0.0
    %1529 = vmatprep.subr.mxu0 0.0
    %1530 = vmatpush1.msra.mxu0 0.0
    %1531 = vmatprep.subr.mxu0 0.0
    %1532 = vmatpush1.msra.mxu0 0.0
    %1533 = vmatprep.subr.mxu0 0.0
    %1534 = vmatpush1.msra.mxu0 0.0
    %1535 = vmatprep.subr.mxu0 0.0
    %1536 = vmatpush1.msra.mxu0 0.0
    %1537 = vmatprep.subr.mxu0 0.0
    %1538 = vmatpush1.msra.mxu0 0.0
    %1539 = vmatprep.subr.mxu0 0.0
    %1540 = vmatpush1.msra.mxu0 0.0
    %1541 = vmatprep.subr.mxu0 0.0
    %1542 = vmatpush1.msra.mxu0 0.0
    %1543 = vmatprep.subr.mxu0 0.0
    %1544 = vmatpush1.msra.mxu0 0.0
    %1545 = vmatprep.subr.mxu0 0.0
    %1546 = vmatpush1.msra.mxu0 0.0
    %1547 = vmatprep.subr.mxu0 0.0
    %1548 = vmatpush1.msra.mxu0 0.0
    %1549 = vmatprep.mubr.f32.mxu0 0.0
    %v1550 = vand.u32 %v1244, 4294901760
    %v1551 = vsub.f32 %v1244, %v1550
    %v1552 = vand.u32 %v1551, 4294901760
    %1553 = vmatmul.mubr.f32.gmra.mrb[0].mxu0 %v1552
    %v1554 = vpop.f32.mrb[0].mxu0
    %v1555 = vadd.f32 %v1479, %v1554
    %v1556 = vpop.f32.mrb[0].mxu0
    %v1557 = vadd.f32 %v1481, %v1556
    %1558 = vdwg.mxu0
    %v1559 = vand.u32 %v1238, 4294901760
    %v1560 = vsub.f32 %v1238, %v1559
    %v1561 = vand.u32 %v1560, 4294901760
    %1562 = vmatprep.subr.mxu0 %v1561
    %v1563 = vand.u32 %v1237, 4294901760
    %v1564 = vsub.f32 %v1237, %v1563
    %v1565 = vand.u32 %v1564, 4294901760
    %1566 = vmatpush1.msra.mxu0 %v1565
    %1567 = vmatprep.subr.mxu0 0.0
    %1568 = vmatpush1.msra.mxu0 0.0
    %1569 = vmatprep.subr.mxu0 0.0
    %1570 = vmatpush1.msra.mxu0 0.0
    %1571 = vmatprep.subr.mxu0 0.0
    %1572 = vmatpush1.msra.mxu0 0.0
    %1573 = vmatprep.subr.mxu0 0.0
    %1574 = vmatpush1.msra.mxu0 0.0
    %1575 = vmatprep.subr.mxu0 0.0
    %1576 = vmatpush1.msra.mxu0 0.0
    %1577 = vmatprep.subr.mxu0 0.0
    %1578 = vmatpush1.msra.mxu0 0.0
    %1579 = vmatprep.subr.mxu0 0.0
    %1580 = vmatpush1.msra.mxu0 0.0
    %1581 = vmatprep.subr.mxu0 0.0
    %1582 = vmatpush1.msra.mxu0 0.0
    %1583 = vmatprep.subr.mxu0 0.0
    %1584 = vmatpush1.msra.mxu0 0.0
    %1585 = vmatprep.subr.mxu0 0.0
    %1586 = vmatpush1.msra.mxu0 0.0
    %1587 = vmatprep.subr.mxu0 0.0
    %1588 = vmatpush1.msra.mxu0 0.0
    %1589 = vmatprep.subr.mxu0 0.0
    %1590 = vmatpush1.msra.mxu0 0.0
    %1591 = vmatprep.subr.mxu0 0.0
    %1592 = vmatpush1.msra.mxu0 0.0
    %1593 = vmatprep.subr.mxu0 0.0
    %1594 = vmatpush1.msra.mxu0 0.0
    %1595 = vmatprep.subr.mxu0 0.0
    %1596 = vmatpush1.msra.mxu0 0.0
    %1597 = vmatprep.subr.mxu0 0.0
    %1598 = vmatpush1.msra.mxu0 0.0
    %1599 = vmatprep.subr.mxu0 0.0
    %1600 = vmatpush1.msra.mxu0 0.0
    %1601 = vmatprep.subr.mxu0 0.0
    %1602 = vmatpush1.msra.mxu0 0.0
    %1603 = vmatprep.subr.mxu0 0.0
    %1604 = vmatpush1.msra.mxu0 0.0
    %1605 = vmatprep.subr.mxu0 0.0
    %1606 = vmatpush1.msra.mxu0 0.0
    %1607 = vmatprep.subr.mxu0 0.0
    %1608 = vmatpush1.msra.mxu0 0.0
    %1609 = vmatprep.subr.mxu0 0.0
    %1610 = vmatpush1.msra.mxu0 0.0
    %1611 = vmatprep.subr.mxu0 0.0
    %1612 = vmatpush1.msra.mxu0 0.0
    %1613 = vmatprep.subr.mxu0 0.0
    %1614 = vmatpush1.msra.mxu0 0.0
    %1615 = vmatprep.subr.mxu0 0.0
    %1616 = vmatpush1.msra.mxu0 0.0
    %1617 = vmatprep.subr.mxu0 0.0
    %1618 = vmatpush1.msra.mxu0 0.0
    %1619 = vmatprep.subr.mxu0 0.0
    %1620 = vmatpush1.msra.mxu0 0.0
    %1621 = vmatprep.subr.mxu0 0.0
    %1622 = vmatpush1.msra.mxu0 0.0
    %1623 = vmatprep.subr.mxu0 0.0
    %1624 = vmatpush1.msra.mxu0 0.0
    %1625 = vmatprep.subr.mxu0 0.0
    %1626 = vmatpush1.msra.mxu0 0.0
    %1627 = vmatprep.subr.mxu0 0.0
    %1628 = vmatpush1.msra.mxu0 0.0
    %1629 = vmatprep.mubr.f32.mxu0 0.0
    %v1630 = vand.u32 %v1244, 4294901760
    %1631 = vmatmul.mubr.f32.gmra.mrb[0].mxu0 %v1630
    %v1632 = vpop.f32.mrb[0].mxu0
    %v1633 = vadd.f32 %v1555, %v1632
    %v1634 = vpop.f32.mrb[0].mxu0
    %v1635 = vadd.f32 %v1557, %v1634
    %1636 = vdwg.mxu0
    %v1637 = vand.u32 %v1238, 4294901760
    %1638 = vmatprep.subr.mxu0 %v1637
    %v1639 = vand.u32 %v1237, 4294901760
    %1640 = vmatpush1.msra.mxu0 %v1639
    %1641 = vmatprep.subr.mxu0 0.0
    %1642 = vmatpush1.msra.mxu0 0.0
    %1643 = vmatprep.subr.mxu0 0.0
    %1644 = vmatpush1.msra.mxu0 0.0
    %1645 = vmatprep.subr.mxu0 0.0
    %1646 = vmatpush1.msra.mxu0 0.0
    %1647 = vmatprep.subr.mxu0 0.0
    %1648 = vmatpush1.msra.mxu0 0.0
    %1649 = vmatprep.subr.mxu0 0.0
    %1650 = vmatpush1.msra.mxu0 0.0
    %1651 = vmatprep.subr.mxu0 0.0
    %1652 = vmatpush1.msra.mxu0 0.0
    %1653 = vmatprep.subr.mxu0 0.0
    %1654 = vmatpush1.msra.mxu0 0.0
    %1655 = vmatprep.subr.mxu0 0.0
    %1656 = vmatpush1.msra.mxu0 0.0
    %1657 = vmatprep.subr.mxu0 0.0
    %1658 = vmatpush1.msra.mxu0 0.0
    %1659 = vmatprep.subr.mxu0 0.0
    %1660 = vmatpush1.msra.mxu0 0.0
    %1661 = vmatprep.subr.mxu0 0.0
    %1662 = vmatpush1.msra.mxu0 0.0
    %1663 = vmatprep.subr.mxu0 0.0
    %1664 = vmatpush1.msra.mxu0 0.0
    %1665 = vmatprep.subr.mxu0 0.0
    %1666 = vmatpush1.msra.mxu0 0.0
    %1667 = vmatprep.subr.mxu0 0.0
    %1668 = vmatpush1.msra.mxu0 0.0
    %1669 = vmatprep.subr.mxu0 0.0
    %1670 = vmatpush1.msra.mxu0 0.0
    %1671 = vmatprep.subr.mxu0 0.0
    %1672 = vmatpush1.msra.mxu0 0.0
    %1673 = vmatprep.subr.mxu0 0.0
    %1674 = vmatpush1.msra.mxu0 0.0
    %1675 = vmatprep.subr.mxu0 0.0
    %1676 = vmatpush1.msra.mxu0 0.0
    %1677 = vmatprep.subr.mxu0 0.0
    %1678 = vmatpush1.msra.mxu0 0.0
    %1679 = vmatprep.subr.mxu0 0.0
    %1680 = vmatpush1.msra.mxu0 0.0
    %1681 = vmatprep.subr.mxu0 0.0
    %1682 = vmatpush1.msra.mxu0 0.0
    %1683 = vmatprep.subr.mxu0 0.0
    %1684 = vmatpush1.msra.mxu0 0.0
    %1685 = vmatprep.subr.mxu0 0.0
    %1686 = vmatpush1.msra.mxu0 0.0
    %1687 = vmatprep.subr.mxu0 0.0
    %1688 = vmatpush1.msra.mxu0 0.0
    %1689 = vmatprep.subr.mxu0 0.0
    %1690 = vmatpush1.msra.mxu0 0.0
    %1691 = vmatprep.subr.mxu0 0.0
    %1692 = vmatpush1.msra.mxu0 0.0
    %1693 = vmatprep.subr.mxu0 0.0
    %1694 = vmatpush1.msra.mxu0 0.0
    %1695 = vmatprep.subr.mxu0 0.0
    %1696 = vmatpush1.msra.mxu0 0.0
    %1697 = vmatprep.subr.mxu0 0.0
    %1698 = vmatpush1.msra.mxu0 0.0
    %1699 = vmatprep.subr.mxu0 0.0
    %1700 = vmatpush1.msra.mxu0 0.0
    %1701 = vmatprep.subr.mxu0 0.0
    %1702 = vmatpush1.msra.mxu0 0.0
    %1703 = vmatprep.mubr.f32.mxu0 0.0
    %v1704 = vand.u32 %v1244, 4294901760
    %1705 = vmatmul.mubr.f32.gmra.mrb[0].mxu0 %v1704
    %v1706 = vpop.f32.mrb[0].mxu0
    %v1707 = vadd.f32 %v1633, %v1706
    %v1708 = vpop.f32.mrb[0].mxu0
    %v1709 = vadd.f32 %v1635, %v1708
    %1710 = vdwg.mxu0
    %v1711 = vand.u32 %v1240, 4294901760
    %1712 = vmatprep.subr.mxu0 %v1711
    %v1713 = vand.u32 %v1239, 4294901760
    %1714 = vmatpush1.msra.mxu0 %v1713
    %1715 = vmatprep.subr.mxu0 0.0
    %1716 = vmatpush1.msra.mxu0 0.0
    %1717 = vmatprep.subr.mxu0 0.0
    %1718 = vmatpush1.msra.mxu0 0.0
    %1719 = vmatprep.subr.mxu0 0.0
    %1720 = vmatpush1.msra.mxu0 0.0
    %1721 = vmatprep.subr.mxu0 0.0
    %1722 = vmatpush1.msra.mxu0 0.0
    %1723 = vmatprep.subr.mxu0 0.0
    %1724 = vmatpush1.msra.mxu0 0.0
    %1725 = vmatprep.subr.mxu0 0.0
    %1726 = vmatpush1.msra.mxu0 0.0
    %1727 = vmatprep.subr.mxu0 0.0
    %1728 = vmatpush1.msra.mxu0 0.0
    %1729 = vmatprep.subr.mxu0 0.0
    %1730 = vmatpush1.msra.mxu0 0.0
    %1731 = vmatprep.subr.mxu0 0.0
    %1732 = vmatpush1.msra.mxu0 0.0
    %1733 = vmatprep.subr.mxu0 0.0
    %1734 = vmatpush1.msra.mxu0 0.0
    %1735 = vmatprep.subr.mxu0 0.0
    %1736 = vmatpush1.msra.mxu0 0.0
    %1737 = vmatprep.subr.mxu0 0.0
    %1738 = vmatpush1.msra.mxu0 0.0
    %1739 = vmatprep.subr.mxu0 0.0
    %1740 = vmatpush1.msra.mxu0 0.0
    %1741 = vmatprep.subr.mxu0 0.0
    %1742 = vmatpush1.msra.mxu0 0.0
    %1743 = vmatprep.subr.mxu0 0.0
    %1744 = vmatpush1.msra.mxu0 0.0
    %1745 = vmatprep.subr.mxu0 0.0
    %1746 = vmatpush1.msra.mxu0 0.0
    %1747 = vmatprep.subr.mxu0 0.0
    %1748 = vmatpush1.msra.mxu0 0.0
    %1749 = vmatprep.subr.mxu0 0.0
    %1750 = vmatpush1.msra.mxu0 0.0
    %1751 = vmatprep.subr.mxu0 0.0
    %1752 = vmatpush1.msra.mxu0 0.0
    %1753 = vmatprep.subr.mxu0 0.0
    %1754 = vmatpush1.msra.mxu0 0.0
    %1755 = vmatprep.subr.mxu0 0.0
    %1756 = vmatpush1.msra.mxu0 0.0
    %1757 = vmatprep.subr.mxu0 0.0
    %1758 = vmatpush1.msra.mxu0 0.0
    %1759 = vmatprep.subr.mxu0 0.0
    %1760 = vmatpush1.msra.mxu0 0.0
    %1761 = vmatprep.subr.mxu0 0.0
    %1762 = vmatpush1.msra.mxu0 0.0
    %1763 = vmatprep.subr.mxu0 0.0
    %1764 = vmatpush1.msra.mxu0 0.0
    %1765 = vmatprep.subr.mxu0 0.0
    %1766 = vmatpush1.msra.mxu0 0.0
    %1767 = vmatprep.subr.mxu0 0.0
    %1768 = vmatpush1.msra.mxu0 0.0
    %1769 = vmatprep.subr.mxu0 0.0
    %1770 = vmatpush1.msra.mxu0 0.0
    %1771 = vmatprep.subr.mxu0 0.0
    %1772 = vmatpush1.msra.mxu0 0.0
    %1773 = vmatprep.subr.mxu0 0.0
    %1774 = vmatpush1.msra.mxu0 0.0
    %1775 = vmatprep.subr.mxu0 0.0
    %1776 = vmatpush1.msra.mxu0 0.0
    %1777 = vmatprep.mubr.f32.mxu0 0.0
    %v1778 = vand.u32 %v1244, 4294901760
    %v1779 = vsub.f32 %v1244, %v1778
    %v1780 = vand.u32 %v1779, 4294901760
    %v1781 = vsub.f32 %v1779, %v1780
    %v1782 = vand.u32 %v1781, 4294901760
    %1783 = vmatmul.mubr.f32.gmra.mrb[0].mxu0 %v1782
    %v1784 = vpop.f32.mrb[0].mxu0
    %v1785 = vadd.f32 0.0, %v1784
    %v1786 = vpop.f32.mrb[0].mxu0
    %v1787 = vadd.f32 0.0, %v1786
    %1788 = vdwg.mxu0
    %v1789 = vand.u32 %v1240, 4294901760
    %v1790 = vsub.f32 %v1240, %v1789
    %v1791 = vand.u32 %v1790, 4294901760
    %v1792 = vsub.f32 %v1790, %v1791
    %v1793 = vand.u32 %v1792, 4294901760
    %1794 = vmatprep.subr.mxu0 %v1793
    %v1795 = vand.u32 %v1239, 4294901760
    %v1796 = vsub.f32 %v1239, %v1795
    %v1797 = vand.u32 %v1796, 4294901760
    %v1798 = vsub.f32 %v1796, %v1797
    %v1799 = vand.u32 %v1798, 4294901760
    %1800 = vmatpush1.msra.mxu0 %v1799
    %1801 = vmatprep.subr.mxu0 0.0
    %1802 = vmatpush1.msra.mxu0 0.0
    %1803 = vmatprep.subr.mxu0 0.0
    %1804 = vmatpush1.msra.mxu0 0.0
    %1805 = vmatprep.subr.mxu0 0.0
    %1806 = vmatpush1.msra.mxu0 0.0
    %1807 = vmatprep.subr.mxu0 0.0
    %1808 = vmatpush1.msra.mxu0 0.0
    %1809 = vmatprep.subr.mxu0 0.0
    %1810 = vmatpush1.msra.mxu0 0.0
    %1811 = vmatprep.subr.mxu0 0.0
    %1812 = vmatpush1.msra.mxu0 0.0
    %1813 = vmatprep.subr.mxu0 0.0
    %1814 = vmatpush1.msra.mxu0 0.0
    %1815 = vmatprep.subr.mxu0 0.0
    %1816 = vmatpush1.msra.mxu0 0.0
    %1817 = vmatprep.subr.mxu0 0.0
    %1818 = vmatpush1.msra.mxu0 0.0
    %1819 = vmatprep.subr.mxu0 0.0
    %1820 = vmatpush1.msra.mxu0 0.0
    %1821 = vmatprep.subr.mxu0 0.0
    %1822 = vmatpush1.msra.mxu0 0.0
    %1823 = vmatprep.subr.mxu0 0.0
    %1824 = vmatpush1.msra.mxu0 0.0
    %1825 = vmatprep.subr.mxu0 0.0
    %1826 = vmatpush1.msra.mxu0 0.0
    %1827 = vmatprep.subr.mxu0 0.0
    %1828 = vmatpush1.msra.mxu0 0.0
    %1829 = vmatprep.subr.mxu0 0.0
    %1830 = vmatpush1.msra.mxu0 0.0
    %1831 = vmatprep.subr.mxu0 0.0
    %1832 = vmatpush1.msra.mxu0 0.0
    %1833 = vmatprep.subr.mxu0 0.0
    %1834 = vmatpush1.msra.mxu0 0.0
    %1835 = vmatprep.subr.mxu0 0.0
    %1836 = vmatpush1.msra.mxu0 0.0
    %1837 = vmatprep.subr.mxu0 0.0
    %1838 = vmatpush1.msra.mxu0 0.0
    %1839 = vmatprep.subr.mxu0 0.0
    %1840 = vmatpush1.msra.mxu0 0.0
    %1841 = vmatprep.subr.mxu0 0.0
    %1842 = vmatpush1.msra.mxu0 0.0
    %1843 = vmatprep.subr.mxu0 0.0
    %1844 = vmatpush1.msra.mxu0 0.0
    %1845 = vmatprep.subr.mxu0 0.0
    %1846 = vmatpush1.msra.mxu0 0.0
    %1847 = vmatprep.subr.mxu0 0.0
    %1848 = vmatpush1.msra.mxu0 0.0
    %1849 = vmatprep.subr.mxu0 0.0
    %1850 = vmatpush1.msra.mxu0 0.0
    %1851 = vmatprep.subr.mxu0 0.0
    %1852 = vmatpush1.msra.mxu0 0.0
    %1853 = vmatprep.subr.mxu0 0.0
    %1854 = vmatpush1.msra.mxu0 0.0
    %1855 = vmatprep.subr.mxu0 0.0
    %1856 = vmatpush1.msra.mxu0 0.0
    %1857 = vmatprep.subr.mxu0 0.0
    %1858 = vmatpush1.msra.mxu0 0.0
    %1859 = vmatprep.subr.mxu0 0.0
    %1860 = vmatpush1.msra.mxu0 0.0
    %1861 = vmatprep.subr.mxu0 0.0
    %1862 = vmatpush1.msra.mxu0 0.0
    %1863 = vmatprep.mubr.f32.mxu0 0.0
    %v1864 = vand.u32 %v1244, 4294901760
    %1865 = vmatmul.mubr.f32.gmra.mrb[0].mxu0 %v1864
    %v1866 = vpop.f32.mrb[0].mxu0
    %v1867 = vadd.f32 %v1785, %v1866
    %v1868 = vpop.f32.mrb[0].mxu0
    %v1869 = vadd.f32 %v1787, %v1868
    %1870 = vdwg.mxu0
    %v1871 = vand.u32 %v1240, 4294901760
    %v1872 = vsub.f32 %v1240, %v1871
    %1873 = vmatprep.subr.mxu0 %v1872
    %v1874 = vand.u32 %v1239, 4294901760
    %v1875 = vsub.f32 %v1239, %v1874
    %1876 = vmatpush1.msra.mxu0 %v1875
    %1877 = vmatprep.subr.mxu0 0.0
    %1878 = vmatpush1.msra.mxu0 0.0
    %1879 = vmatprep.subr.mxu0 0.0
    %1880 = vmatpush1.msra.mxu0 0.0
    %1881 = vmatprep.subr.mxu0 0.0
    %1882 = vmatpush1.msra.mxu0 0.0
    %1883 = vmatprep.subr.mxu0 0.0
    %1884 = vmatpush1.msra.mxu0 0.0
    %1885 = vmatprep.subr.mxu0 0.0
    %1886 = vmatpush1.msra.mxu0 0.0
    %1887 = vmatprep.subr.mxu0 0.0
    %1888 = vmatpush1.msra.mxu0 0.0
    %1889 = vmatprep.subr.mxu0 0.0
    %1890 = vmatpush1.msra.mxu0 0.0
    %1891 = vmatprep.subr.mxu0 0.0
    %1892 = vmatpush1.msra.mxu0 0.0
    %1893 = vmatprep.subr.mxu0 0.0
    %1894 = vmatpush1.msra.mxu0 0.0
    %1895 = vmatprep.subr.mxu0 0.0
    %1896 = vmatpush1.msra.mxu0 0.0
    %1897 = vmatprep.subr.mxu0 0.0
    %1898 = vmatpush1.msra.mxu0 0.0
    %1899 = vmatprep.subr.mxu0 0.0
    %1900 = vmatpush1.msra.mxu0 0.0
    %1901 = vmatprep.subr.mxu0 0.0
    %1902 = vmatpush1.msra.mxu0 0.0
    %1903 = vmatprep.subr.mxu0 0.0
    %1904 = vmatpush1.msra.mxu0 0.0
    %1905 = vmatprep.subr.mxu0 0.0
    %1906 = vmatpush1.msra.mxu0 0.0
    %1907 = vmatprep.subr.mxu0 0.0
    %1908 = vmatpush1.msra.mxu0 0.0
    %1909 = vmatprep.subr.mxu0 0.0
    %1910 = vmatpush1.msra.mxu0 0.0
    %1911 = vmatprep.subr.mxu0 0.0
    %1912 = vmatpush1.msra.mxu0 0.0
    %1913 = vmatprep.subr.mxu0 0.0
    %1914 = vmatpush1.msra.mxu0 0.0
    %1915 = vmatprep.subr.mxu0 0.0
    %1916 = vmatpush1.msra.mxu0 0.0
    %1917 = vmatprep.subr.mxu0 0.0
    %1918 = vmatpush1.msra.mxu0 0.0
    %1919 = vmatprep.subr.mxu0 0.0
    %1920 = vmatpush1.msra.mxu0 0.0
    %1921 = vmatprep.subr.mxu0 0.0
    %1922 = vmatpush1.msra.mxu0 0.0
    %1923 = vmatprep.subr.mxu0 0.0
    %1924 = vmatpush1.msra.mxu0 0.0
    %1925 = vmatprep.subr.mxu0 0.0
    %1926 = vmatpush1.msra.mxu0 0.0
    %1927 = vmatprep.subr.mxu0 0.0
    %1928 = vmatpush1.msra.mxu0 0.0
    %1929 = vmatprep.subr.mxu0 0.0
    %1930 = vmatpush1.msra.mxu0 0.0
    %1931 = vmatprep.subr.mxu0 0.0
    %1932 = vmatpush1.msra.mxu0 0.0
    %1933 = vmatprep.subr.mxu0 0.0
    %1934 = vmatpush1.msra.mxu0 0.0
    %1935 = vmatprep.subr.mxu0 0.0
    %1936 = vmatpush1.msra.mxu0 0.0
    %1937 = vmatprep.subr.mxu0 0.0
    %1938 = vmatpush1.msra.mxu0 0.0
    %1939 = vmatprep.mubr.f32.mxu0 0.0
    %v1940 = vand.u32 %v1244, 4294901760
    %v1941 = vsub.f32 %v1244, %v1940
    %1942 = vmatmul.mubr.f32.gmra.mrb[0].mxu0 %v1941
    %v1943 = vpop.f32.mrb[0].mxu0
    %v1944 = vadd.f32 %v1867, %v1943
    %v1945 = vpop.f32.mrb[0].mxu0
    %v1946 = vadd.f32 %v1869, %v1945
    %1947 = vdwg.mxu0
    %v1948 = vand.u32 %v1240, 4294901760
    %1949 = vmatprep.subr.mxu0 %v1948
    %v1950 = vand.u32 %v1239, 4294901760
    %1951 = vmatpush1.msra.mxu0 %v1950
    %1952 = vmatprep.subr.mxu0 0.0
    %1953 = vmatpush1.msra.mxu0 0.0
    %1954 = vmatprep.subr.mxu0 0.0
    %1955 = vmatpush1.msra.mxu0 0.0
    %1956 = vmatprep.subr.mxu0 0.0
    %1957 = vmatpush1.msra.mxu0 0.0
    %1958 = vmatprep.subr.mxu0 0.0
    %1959 = vmatpush1.msra.mxu0 0.0
    %1960 = vmatprep.subr.mxu0 0.0
    %1961 = vmatpush1.msra.mxu0 0.0
    %1962 = vmatprep.subr.mxu0 0.0
    %1963 = vmatpush1.msra.mxu0 0.0
    %1964 = vmatprep.subr.mxu0 0.0
    %1965 = vmatpush1.msra.mxu0 0.0
    %1966 = vmatprep.subr.mxu0 0.0
    %1967 = vmatpush1.msra.mxu0 0.0
    %1968 = vmatprep.subr.mxu0 0.0
    %1969 = vmatpush1.msra.mxu0 0.0
    %1970 = vmatprep.subr.mxu0 0.0
    %1971 = vmatpush1.msra.mxu0 0.0
    %1972 = vmatprep.subr.mxu0 0.0
    %1973 = vmatpush1.msra.mxu0 0.0
    %1974 = vmatprep.subr.mxu0 0.0
    %1975 = vmatpush1.msra.mxu0 0.0
    %1976 = vmatprep.subr.mxu0 0.0
    %1977 = vmatpush1.msra.mxu0 0.0
    %1978 = vmatprep.subr.mxu0 0.0
    %1979 = vmatpush1.msra.mxu0 0.0
    %1980 = vmatprep.subr.mxu0 0.0
    %1981 = vmatpush1.msra.mxu0 0.0
    %1982 = vmatprep.subr.mxu0 0.0
    %1983 = vmatpush1.msra.mxu0 0.0
    %1984 = vmatprep.subr.mxu0 0.0
    %1985 = vmatpush1.msra.mxu0 0.0
    %1986 = vmatprep.subr.mxu0 0.0
    %1987 = vmatpush1.msra.mxu0 0.0
    %1988 = vmatprep.subr.mxu0 0.0
    %1989 = vmatpush1.msra.mxu0 0.0
    %1990 = vmatprep.subr.mxu0 0.0
    %1991 = vmatpush1.msra.mxu0 0.0
    %1992 = vmatprep.subr.mxu0 0.0
    %1993 = vmatpush1.msra.mxu0 0.0
    %1994 = vmatprep.subr.mxu0 0.0
    %1995 = vmatpush1.msra.mxu0 0.0
    %1996 = vmatprep.subr.mxu0 0.0
    %1997 = vmatpush1.msra.mxu0 0.0
    %1998 = vmatprep.subr.mxu0 0.0
    %1999 = vmatpush1.msra.mxu0 0.0
    %2000 = vmatprep.subr.mxu0 0.0
    %2001 = vmatpush1.msra.mxu0 0.0
    %2002 = vmatprep.subr.mxu0 0.0
    %2003 = vmatpush1.msra.mxu0 0.0
    %2004 = vmatprep.subr.mxu0 0.0
    %2005 = vmatpush1.msra.mxu0 0.0
    %2006 = vmatprep.subr.mxu0 0.0
    %2007 = vmatpush1.msra.mxu0 0.0
    %2008 = vmatprep.subr.mxu0 0.0
    %2009 = vmatpush1.msra.mxu0 0.0
    %2010 = vmatprep.subr.mxu0 0.0
    %2011 = vmatpush1.msra.mxu0 0.0
    %2012 = vmatprep.subr.mxu0 0.0
    %2013 = vmatpush1.msra.mxu0 0.0
    %2014 = vmatprep.mubr.f32.mxu0 0.0
    %v2015 = vand.u32 %v1244, 4294901760
    %v2016 = vsub.f32 %v1244, %v2015
    %v2017 = vand.u32 %v2016, 4294901760
    %2018 = vmatmul.mubr.f32.gmra.mrb[0].mxu0 %v2017
    %v2019 = vpop.f32.mrb[0].mxu0
    %v2020 = vadd.f32 %v1944, %v2019
    %v2021 = vpop.f32.mrb[0].mxu0
    %v2022 = vadd.f32 %v1946, %v2021
    %2023 = vdwg.mxu0
    %v2024 = vand.u32 %v1240, 4294901760
    %v2025 = vsub.f32 %v1240, %v2024
    %v2026 = vand.u32 %v2025, 4294901760
    %2027 = vmatprep.subr.mxu0 %v2026
    %v2028 = vand.u32 %v1239, 4294901760
    %v2029 = vsub.f32 %v1239, %v2028
    %v2030 = vand.u32 %v2029, 4294901760
    %2031 = vmatpush1.msra.mxu0 %v2030
    %2032 = vmatprep.subr.mxu0 0.0
    %2033 = vmatpush1.msra.mxu0 0.0
    %2034 = vmatprep.subr.mxu0 0.0
    %2035 = vmatpush1.msra.mxu0 0.0
    %2036 = vmatprep.subr.mxu0 0.0
    %2037 = vmatpush1.msra.mxu0 0.0
    %2038 = vmatprep.subr.mxu0 0.0
    %2039 = vmatpush1.msra.mxu0 0.0
    %2040 = vmatprep.subr.mxu0 0.0
    %2041 = vmatpush1.msra.mxu0 0.0
    %2042 = vmatprep.subr.mxu0 0.0
    %2043 = vmatpush1.msra.mxu0 0.0
    %2044 = vmatprep.subr.mxu0 0.0
    %2045 = vmatpush1.msra.mxu0 0.0
    %2046 = vmatprep.subr.mxu0 0.0
    %2047 = vmatpush1.msra.mxu0 0.0
    %2048 = vmatprep.subr.mxu0 0.0
    %2049 = vmatpush1.msra.mxu0 0.0
    %2050 = vmatprep.subr.mxu0 0.0
    %2051 = vmatpush1.msra.mxu0 0.0
    %2052 = vmatprep.subr.mxu0 0.0
    %2053 = vmatpush1.msra.mxu0 0.0
    %2054 = vmatprep.subr.mxu0 0.0
    %2055 = vmatpush1.msra.mxu0 0.0
    %2056 = vmatprep.subr.mxu0 0.0
    %2057 = vmatpush1.msra.mxu0 0.0
    %2058 = vmatprep.subr.mxu0 0.0
    %2059 = vmatpush1.msra.mxu0 0.0
    %2060 = vmatprep.subr.mxu0 0.0
    %2061 = vmatpush1.msra.mxu0 0.0
    %2062 = vmatprep.subr.mxu0 0.0
    %2063 = vmatpush1.msra.mxu0 0.0
    %2064 = vmatprep.subr.mxu0 0.0
    %2065 = vmatpush1.msra.mxu0 0.0
    %2066 = vmatprep.subr.mxu0 0.0
    %2067 = vmatpush1.msra.mxu0 0.0
    %2068 = vmatprep.subr.mxu0 0.0
    %2069 = vmatpush1.msra.mxu0 0.0
    %2070 = vmatprep.subr.mxu0 0.0
    %2071 = vmatpush1.msra.mxu0 0.0
    %2072 = vmatprep.subr.mxu0 0.0
    %2073 = vmatpush1.msra.mxu0 0.0
    %2074 = vmatprep.subr.mxu0 0.0
    %2075 = vmatpush1.msra.mxu0 0.0
    %2076 = vmatprep.subr.mxu0 0.0
    %2077 = vmatpush1.msra.mxu0 0.0
    %2078 = vmatprep.subr.mxu0 0.0
    %2079 = vmatpush1.msra.mxu0 0.0
    %2080 = vmatprep.subr.mxu0 0.0
    %2081 = vmatpush1.msra.mxu0 0.0
    %2082 = vmatprep.subr.mxu0 0.0
    %2083 = vmatpush1.msra.mxu0 0.0
    %2084 = vmatprep.subr.mxu0 0.0
    %2085 = vmatpush1.msra.mxu0 0.0
    %2086 = vmatprep.subr.mxu0 0.0
    %2087 = vmatpush1.msra.mxu0 0.0
    %2088 = vmatprep.subr.mxu0 0.0
    %2089 = vmatpush1.msra.mxu0 0.0
    %2090 = vmatprep.subr.mxu0 0.0
    %2091 = vmatpush1.msra.mxu0 0.0
    %2092 = vmatprep.subr.mxu0 0.0
    %2093 = vmatpush1.msra.mxu0 0.0
    %2094 = vmatprep.mubr.f32.mxu0 0.0
    %v2095 = vand.u32 %v1244, 4294901760
    %2096 = vmatmul.mubr.f32.gmra.mrb[0].mxu0 %v2095
    %v2097 = vpop.f32.mrb[0].mxu0
    %v2098 = vadd.f32 %v2020, %v2097
    %v2099 = vpop.f32.mrb[0].mxu0
    %v2100 = vadd.f32 %v2022, %v2099
    %2101 = vdwg.mxu0
    %v2102 = vand.u32 %v1240, 4294901760
    %2103 = vmatprep.subr.mxu0 %v2102
    %v2104 = vand.u32 %v1239, 4294901760
    %2105 = vmatpush1.msra.mxu0 %v2104
    %2106 = vmatprep.subr.mxu0 0.0
    %2107 = vmatpush1.msra.mxu0 0.0
    %2108 = vmatprep.subr.mxu0 0.0
    %2109 = vmatpush1.msra.mxu0 0.0
    %2110 = vmatprep.subr.mxu0 0.0
    %2111 = vmatpush1.msra.mxu0 0.0
    %2112 = vmatprep.subr.mxu0 0.0
    %2113 = vmatpush1.msra.mxu0 0.0
    %2114 = vmatprep.subr.mxu0 0.0
    %2115 = vmatpush1.msra.mxu0 0.0
    %2116 = vmatprep.subr.mxu0 0.0
    %2117 = vmatpush1.msra.mxu0 0.0
    %2118 = vmatprep.subr.mxu0 0.0
    %2119 = vmatpush1.msra.mxu0 0.0
    %2120 = vmatprep.subr.mxu0 0.0
    %2121 = vmatpush1.msra.mxu0 0.0
    %2122 = vmatprep.subr.mxu0 0.0
    %2123 = vmatpush1.msra.mxu0 0.0
    %2124 = vmatprep.subr.mxu0 0.0
    %2125 = vmatpush1.msra.mxu0 0.0
    %2126 = vmatprep.subr.mxu0 0.0
    %2127 = vmatpush1.msra.mxu0 0.0
    %2128 = vmatprep.subr.mxu0 0.0
    %2129 = vmatpush1.msra.mxu0 0.0
    %2130 = vmatprep.subr.mxu0 0.0
    %2131 = vmatpush1.msra.mxu0 0.0
    %2132 = vmatprep.subr.mxu0 0.0
    %2133 = vmatpush1.msra.mxu0 0.0
    %2134 = vmatprep.subr.mxu0 0.0
    %2135 = vmatpush1.msra.mxu0 0.0
    %2136 = vmatprep.subr.mxu0 0.0
    %2137 = vmatpush1.msra.mxu0 0.0
    %2138 = vmatprep.subr.mxu0 0.0
    %2139 = vmatpush1.msra.mxu0 0.0
    %2140 = vmatprep.subr.mxu0 0.0
    %2141 = vmatpush1.msra.mxu0 0.0
    %2142 = vmatprep.subr.mxu0 0.0
    %2143 = vmatpush1.msra.mxu0 0.0
    %2144 = vmatprep.subr.mxu0 0.0
    %2145 = vmatpush1.msra.mxu0 0.0
    %2146 = vmatprep.subr.mxu0 0.0
    %2147 = vmatpush1.msra.mxu0 0.0
    %2148 = vmatprep.subr.mxu0 0.0
    %2149 = vmatpush1.msra.mxu0 0.0
    %2150 = vmatprep.subr.mxu0 0.0
    %2151 = vmatpush1.msra.mxu0 0.0
    %2152 = vmatprep.subr.mxu0 0.0
    %2153 = vmatpush1.msra.mxu0 0.0
    %2154 = vmatprep.subr.mxu0 0.0
    %2155 = vmatpush1.msra.mxu0 0.0
    %2156 = vmatprep.subr.mxu0 0.0
    %2157 = vmatpush1.msra.mxu0 0.0
    %2158 = vmatprep.subr.mxu0 0.0
    %2159 = vmatpush1.msra.mxu0 0.0
    %2160 = vmatprep.subr.mxu0 0.0
    %2161 = vmatpush1.msra.mxu0 0.0
    %2162 = vmatprep.subr.mxu0 0.0
    %2163 = vmatpush1.msra.mxu0 0.0
    %2164 = vmatprep.subr.mxu0 0.0
    %2165 = vmatpush1.msra.mxu0 0.0
    %2166 = vmatprep.subr.mxu0 0.0
    %2167 = vmatpush1.msra.mxu0 0.0
    %2168 = vmatprep.mubr.f32.mxu0 0.0
    %v2169 = vand.u32 %v1244, 4294901760
    %2170 = vmatmul.mubr.f32.gmra.mrb[0].mxu0 %v2169
    %v2171 = vpop.f32.mrb[0].mxu0
    %v2172 = vadd.f32 %v2098, %v2171
    %v2173 = vpop.f32.mrb[0].mxu0
    %v2174 = vadd.f32 %v2100, %v2173
    %2175 = vdwg.mxu0
    %s2176 = scalar_lea.vmem [#allocation7], 288
    %v2177 = vld [vmem:[%s2176] sm:$0xff]
    %v2178 = vld [vmem:[%s2176 + $0x8] sm:$0xff]
    %v2179 = vld [vmem:[%s2176 + $0x10] sm:$0xff]
    %v2180 = vld [vmem:[%s2176 + $0x18] sm:$0xff]
    %2181 = vrot.lane.b32.xlu0 %v1707, 17
    %v2182 = vpop.permute.xlu0 %2181
    %2183 = vrot.lane.b32.xlu0 %v1709, 17
    %v2184 = vpop.permute.xlu0 %2183
    %2185 = vrot.lane.b32.xlu0 %v2172, 17
    %v2186 = vpop.permute.xlu0 %2185
    %2187 = vrot.lane.b32.xlu0 %v2174, 17
    %v2188 = vpop.permute.xlu0 %2187
    %v2189 = vsel %vm1025, %v2186, %v2188
    %v2190 = vsel %vm1025, %v2184, %v2186
    %v2191 = vsel %vm1025, %v2182, %v2184
    %v2192 = vsel %vm1025, %v2188, %v2182
    %v2193 = vld [vmem:[#allocation7] sm:$0xff]
    %v2194 = vld [vmem:[#allocation7 + $0x8] sm:$0xff]
    %v2195 = vld [vmem:[#allocation7 + $0x10] sm:$0xff]
    %v2196 = vld [vmem:[#allocation7 + $0x18] sm:$0xff]
    %v2197 = vmul.f32 %v2192, %v2193
    %v2198 = vmul.f32 %v2191, %v2194
    %v2199 = vmul.f32 %v2190, %v2195
    %v2200 = vmul.f32 %v2189, %v2196
    %v2201 = vadd.f32 %v2177, %v2197
    %v2202 = vadd.f32 %v2178, %v2198
    %v2203 = vadd.f32 %v2179, %v2199
    %v2204 = vadd.f32 %v2180, %v2200
    %2205 = vrot.lane.b32.xlu0 %v1707, 16
    %v2206 = vpop.permute.xlu0 %2205
    %2207 = vrot.lane.b32.xlu0 %v1709, 16
    %v2208 = vpop.permute.xlu0 %2207
    %2209 = vrot.lane.b32.xlu0 %v2172, 16
    %v2210 = vpop.permute.xlu0 %2209
    %2211 = vrot.lane.b32.xlu0 %v2174, 16
    %v2212 = vpop.permute.xlu0 %2211
    %v2213 = vsel %vm1050, %v2210, %v2212
    %v2214 = vsel %vm1050, %v2208, %v2210
    %v2215 = vsel %vm1050, %v2206, %v2208
    %v2216 = vsel %vm1050, %v2212, %v2206
    %s2217 = scalar_lea.vmem [#allocation7], 32
    %v2218 = vld [vmem:[%s2217] sm:$0xff]
    %v2219 = vld [vmem:[%s2217 + $0x8] sm:$0xff]
    %v2220 = vld [vmem:[%s2217 + $0x10] sm:$0xff]
    %v2221 = vld [vmem:[%s2217 + $0x18] sm:$0xff]
    %v2222 = vmul.f32 %v2216, %v2218
    %v2223 = vmul.f32 %v2215, %v2219
    %v2224 = vmul.f32 %v2214, %v2220
    %v2225 = vmul.f32 %v2213, %v2221
    %v2226 = vadd.f32 %v2201, %v2222
    %v2227 = vadd.f32 %v2202, %v2223
    %v2228 = vadd.f32 %v2203, %v2224
    %v2229 = vadd.f32 %v2204, %v2225
    %2230 = vrot.lane.b32.xlu0 %v1707, 15
    %v2231 = vpop.permute.xlu0 %2230
    %2232 = vrot.lane.b32.xlu0 %v1709, 15
    %v2233 = vpop.permute.xlu0 %2232
    %2234 = vrot.lane.b32.xlu0 %v2172, 15
    %v2235 = vpop.permute.xlu0 %2234
    %2236 = vrot.lane.b32.xlu0 %v2174, 15
    %v2237 = vpop.permute.xlu0 %2236
    %v2238 = vsel %vm1076, %v2235, %v2237
    %v2239 = vsel %vm1076, %v2233, %v2235
    %v2240 = vsel %vm1076, %v2231, %v2233
    %v2241 = vsel %vm1076, %v2237, %v2231
    %s2242 = scalar_lea.vmem [#allocation7], 64
    %v2243 = vld [vmem:[%s2242] sm:$0xff]
    %v2244 = vld [vmem:[%s2242 + $0x8] sm:$0xff]
    %v2245 = vld [vmem:[%s2242 + $0x10] sm:$0xff]
    %v2246 = vld [vmem:[%s2242 + $0x18] sm:$0xff]
    %v2247 = vmul.f32 %v2241, %v2243
    %v2248 = vmul.f32 %v2240, %v2244
    %v2249 = vmul.f32 %v2239, %v2245
    %v2250 = vmul.f32 %v2238, %v2246
    %v2251 = vadd.f32 %v2226, %v2247
    %v2252 = vadd.f32 %v2227, %v2248
    %v2253 = vadd.f32 %v2228, %v2249
    %v2254 = vadd.f32 %v2229, %v2250
    %2255 = vrot.lane.b32.xlu0 %v1707, 1
    %v2256 = vpop.permute.xlu0 %2255
    %2257 = vrot.lane.b32.xlu0 %v1709, 1
    %v2258 = vpop.permute.xlu0 %2257
    %2259 = vrot.lane.b32.xlu0 %v2172, 1
    %v2260 = vpop.permute.xlu0 %2259
    %2261 = vrot.lane.b32.xlu0 %v2174, 1
    %v2262 = vpop.permute.xlu0 %2261
    %v2263 = vsel %vm1102, %v2260, %v2262
    %v2264 = vsel %vm1102, %v2258, %v2260
    %v2265 = vsel %vm1102, %v2256, %v2258
    %v2266 = vsel %vm1102, %v2262, %v2256
    %s2267 = scalar_lea.vmem [#allocation7], 96
    %v2268 = vld [vmem:[%s2267] sm:$0xff]
    %v2269 = vld [vmem:[%s2267 + $0x8] sm:$0xff]
    %v2270 = vld [vmem:[%s2267 + $0x10] sm:$0xff]
    %v2271 = vld [vmem:[%s2267 + $0x18] sm:$0xff]
    %v2272 = vmul.f32 %v2266, %v2268
    %v2273 = vmul.f32 %v2265, %v2269
    %v2274 = vmul.f32 %v2264, %v2270
    %v2275 = vmul.f32 %v2263, %v2271
    %v2276 = vadd.f32 %v2251, %v2272
    %v2277 = vadd.f32 %v2252, %v2273
    %v2278 = vadd.f32 %v2253, %v2274
    %v2279 = vadd.f32 %v2254, %v2275
    %s2280 = scalar_lea.vmem [#allocation7], 128
    %v2281 = vld [vmem:[%s2280] sm:$0xff]
    %v2282 = vld [vmem:[%s2280 + $0x8] sm:$0xff]
    %v2283 = vld [vmem:[%s2280 + $0x10] sm:$0xff]
    %v2284 = vld [vmem:[%s2280 + $0x18] sm:$0xff]
    %v2285 = vmul.f32 %v1707, %v2281
    %v2286 = vmul.f32 %v1709, %v2282
    %v2287 = vmul.f32 %v2172, %v2283
    %v2288 = vmul.f32 %v2174, %v2284
    %v2289 = vadd.f32 %v2276, %v2285
    %v2290 = vadd.f32 %v2277, %v2286
    %v2291 = vadd.f32 %v2278, %v2287
    %v2292 = vadd.f32 %v2279, %v2288
    %2293 = vrot.lane.b32.xlu0 %v1707, 127
    %v2294 = vpop.permute.xlu0 %2293
    %2295 = vrot.lane.b32.xlu0 %v1709, 127
    %v2296 = vpop.permute.xlu0 %2295
    %2297 = vrot.lane.b32.xlu0 %v2172, 127
    %v2298 = vpop.permute.xlu0 %2297
    %2299 = vrot.lane.b32.xlu0 %v2174, 127
    %v2300 = vpop.permute.xlu0 %2299
    %v2301 = vsel %vm1141, %v2298, %v2300
    %v2302 = vsel %vm1141, %v2296, %v2298
    %v2303 = vsel %vm1141, %v2294, %v2296
    %v2304 = vsel %vm1141, %v2300, %v2294
    %s2305 = scalar_lea.vmem [#allocation7], 160
    %v2306 = vld [vmem:[%s2305] sm:$0xff]
    %v2307 = vld [vmem:[%s2305 + $0x8] sm:$0xff]
    %v2308 = vld [vmem:[%s2305 + $0x10] sm:$0xff]
    %v2309 = vld [vmem:[%s2305 + $0x18] sm:$0xff]
    %v2310 = vmul.f32 %v2303, %v2306
    %v2311 = vmul.f32 %v2302, %v2307
    %v2312 = vmul.f32 %v2301, %v2308
    %v2313 = vmul.f32 %v2304, %v2309
    %v2314 = vadd.f32 %v2289, %v2310
    %v2315 = vadd.f32 %v2290, %v2311
    %v2316 = vadd.f32 %v2291, %v2312
    %v2317 = vadd.f32 %v2292, %v2313
    %2318 = vrot.lane.b32.xlu0 %v1707, 113
    %v2319 = vpop.permute.xlu0 %2318
    %2320 = vrot.lane.b32.xlu0 %v1709, 113
    %v2321 = vpop.permute.xlu0 %2320
    %2322 = vrot.lane.b32.xlu0 %v2172, 113
    %v2323 = vpop.permute.xlu0 %2322
    %2324 = vrot.lane.b32.xlu0 %v2174, 113
    %v2325 = vpop.permute.xlu0 %2324
    %v2326 = vsel %vm1167, %v2323, %v2325
    %v2327 = vsel %vm1167, %v2321, %v2323
    %v2328 = vsel %vm1167, %v2319, %v2321
    %v2329 = vsel %vm1167, %v2325, %v2319
    %s2330 = scalar_lea.vmem [#allocation7], 192
    %v2331 = vld [vmem:[%s2330] sm:$0xff]
    %v2332 = vld [vmem:[%s2330 + $0x8] sm:$0xff]
    %v2333 = vld [vmem:[%s2330 + $0x10] sm:$0xff]
    %v2334 = vld [vmem:[%s2330 + $0x18] sm:$0xff]
    %v2335 = vmul.f32 %v2328, %v2331
    %v2336 = vmul.f32 %v2327, %v2332
    %v2337 = vmul.f32 %v2326, %v2333
    %v2338 = vmul.f32 %v2329, %v2334
    %v2339 = vadd.f32 %v2314, %v2335
    %v2340 = vadd.f32 %v2315, %v2336
    %v2341 = vadd.f32 %v2316, %v2337
    %v2342 = vadd.f32 %v2317, %v2338
    %2343 = vrot.lane.b32.xlu0 %v1707, 112
    %v2344 = vpop.permute.xlu0 %2343
    %2345 = vrot.lane.b32.xlu0 %v1709, 112
    %v2346 = vpop.permute.xlu0 %2345
    %2347 = vrot.lane.b32.xlu0 %v2172, 112
    %v2348 = vpop.permute.xlu0 %2347
    %2349 = vrot.lane.b32.xlu0 %v2174, 112
    %v2350 = vpop.permute.xlu0 %2349
    %v2351 = vsel %vm1193, %v2348, %v2350
    %v2352 = vsel %vm1193, %v2346, %v2348
    %v2353 = vsel %vm1193, %v2344, %v2346
    %v2354 = vsel %vm1193, %v2350, %v2344
    %s2355 = scalar_lea.vmem [#allocation7], 224
    %v2356 = vld [vmem:[%s2355] sm:$0xff]
    %v2357 = vld [vmem:[%s2355 + $0x8] sm:$0xff]
    %v2358 = vld [vmem:[%s2355 + $0x10] sm:$0xff]
    %v2359 = vld [vmem:[%s2355 + $0x18] sm:$0xff]
    %v2360 = vmul.f32 %v2353, %v2356
    %v2361 = vmul.f32 %v2352, %v2357
    %v2362 = vmul.f32 %v2351, %v2358
    %v2363 = vmul.f32 %v2354, %v2359
    %v2364 = vadd.f32 %v2339, %v2360
    %v2365 = vadd.f32 %v2340, %v2361
    %v2366 = vadd.f32 %v2341, %v2362
    %v2367 = vadd.f32 %v2342, %v2363
    %2368 = vrot.lane.b32.xlu0 %v1707, 111
    %v2369 = vpop.permute.xlu0 %2368
    %2370 = vrot.lane.b32.xlu0 %v1709, 111
    %v2371 = vpop.permute.xlu0 %2370
    %2372 = vrot.lane.b32.xlu0 %v2172, 111
    %v2373 = vpop.permute.xlu0 %2372
    %2374 = vrot.lane.b32.xlu0 %v2174, 111
    %v2375 = vpop.permute.xlu0 %2374
    %v2376 = vsel %vm1219, %v2373, %v2375
    %v2377 = vsel %vm1219, %v2371, %v2373
    %v2378 = vsel %vm1219, %v2369, %v2371
    %v2379 = vsel %vm1219, %v2375, %v2369
    %s2380 = scalar_lea.vmem [#allocation7], 256
    %v2381 = vld [vmem:[%s2380] sm:$0xff]
    %v2382 = vld [vmem:[%s2380 + $0x8] sm:$0xff]
    %v2383 = vld [vmem:[%s2380 + $0x10] sm:$0xff]
    %v2384 = vld [vmem:[%s2380 + $0x18] sm:$0xff]
    %v2385 = vmul.f32 %v2378, %v2381
    %v2386 = vmul.f32 %v2377, %v2382
    %v2387 = vmul.f32 %v2376, %v2383
    %v2388 = vmul.f32 %v2379, %v2384
    %v2389 = vadd.f32 %v2364, %v2385
    %v2390 = vadd.f32 %v2365, %v2386
    %v2391 = vadd.f32 %v2366, %v2387
    %v2392 = vadd.f32 %v2367, %v2388
    %v2393 = vmax.f32 %v2389, 0.0
    %v2394 = vmax.f32 %v2390, 0.0
    %v2395 = vmax.f32 %v2391, 0.0
    %v2396 = vmax.f32 %v2392, 0.0
    %2397 = vst [vmem:[#allocation8] sm:$0xff] %v2393
    %2398 = vst [vmem:[#allocation8 + $0x8] sm:$0xff] %v2394
    %2399 = vst [vmem:[#allocation8 + $0x10] sm:$0xff] %v2395
    %2400 = vst [vmem:[#allocation8 + $0x18] sm:$0xff] %v2396
    // Predicated region
    $region34: #{tpu_custom_call.1} parent=1 // pred_check
      _
    $region35: #{tpu_custom_call.1} parent=1 // pred_check_branch
      %2402 = sbr.rel (0) target = $region37
    $region36: #{tpu_custom_call.1} parent=1 // pred_region
      %s2404 = ssub.s32 512, 512
      %2405 = vsyncadd [#allocation4], %s2404
      %s2407 = sshll.u32 [#allocation8], 4
      %s2408 = int_to_ptr.vmem [resolvable:$true] %s2407
      %2410 = dma.vmem_to_hbm [thread:$0]  %s2408, 512, %s5, [#allocation4]
    $region37: #{tpu_custom_call.1} parent=1 // pred_fallthru
      _
    // Predicated region
    $region38: #{tpu_custom_call.1} parent=1 // pred_check
      _
    $region39: #{tpu_custom_call.1} parent=1 // pred_check_branch
      %2412 = sbr.rel (0) target = $region41
    $region40: #{tpu_custom_call.1} parent=1 // pred_region
      %2413 = dma.done [#allocation4], 512
    $region41: #{tpu_custom_call.1} parent=1 // pred_fallthru
      _
    %2414 = vsyncpa [#allocation3], 1
    %2415 = vsyncpa [#allocation6], 1
    %2416 = vsyncpa [#allocation4], 1

</llo_original>
